<compile_context>
chip_gen: v6e
topology: v6e:2x2x1
jax: 0.10.0
libtpu: 0.0.40
codegen_flags: <defaults>
</compile_context>

<pallas_src>
import functools
import jax
import jax.numpy as jnp
from jax.experimental import pallas as pl
from jax.experimental.pallas import tpu as pltpu

# Logical (PyTorch) dims and their lane-aligned padded counterparts.
D_IN, D_H1, D_H2, D_H3, D_OUT = 28 * 28, 500, 250, 125, 10
P_IN, P_H1, P_H2, P_H3, P_OUT = 896, 512, 256, 128, 128  # multiples of 128

MAX_TB = 256  # batch tile (MXU-height friendly on v6e/v7x, fine on v5e)


def _round_up(x, m):
    return ((x + m - 1) // m) * m


def mlp_kernel(x_ref,
               w1_ref, b1_ref,
               w2_ref, b2_ref,
               w3_ref, b3_ref,
               w4_ref, b4_ref,
               o_ref):
    # fc1 + ReLU  (bf16 inputs, f32 accumulation, bias+ReLU fused on the f32 accumulator)
    h = jnp.maximum(
        jnp.dot(x_ref[...], w1_ref[...], preferred_element_type=jnp.float32) + b1_ref[...],
        0.0).astype(jnp.bfloat16)
    # fc2 + ReLU
    h = jnp.maximum(
        jnp.dot(h, w2_ref[...], preferred_element_type=jnp.float32) + b2_ref[...],
        0.0).astype(jnp.bfloat16)
    # fc3 + ReLU
    h = jnp.maximum(
        jnp.dot(h, w3_ref[...], preferred_element_type=jnp.float32) + b3_ref[...],
        0.0).astype(jnp.bfloat16)
    # fc4 (no activation)
    o_ref[...] = (jnp.dot(h, w4_ref[...], preferred_element_type=jnp.float32)
                  + b4_ref[...]).astype(o_ref.dtype)


def _pad2(a, rows, cols, dtype):
    """Zero-pad a 2-D array to (rows, cols) and cast."""
    r, c = a.shape
    return jnp.pad(a, ((0, rows - r), (0, cols - c))).astype(dtype)


def prepare_params(params):
    """Pad weights/biases to lane-aligned shapes; weights -> bf16, biases -> f32."""
    return {
        "w1": _pad2(params["w1"], P_IN, P_H1, jnp.bfloat16),
        "b1": _pad2(params["b1"], 1, P_H1, jnp.float32),
        "w2": _pad2(params["w2"], P_H1, P_H2, jnp.bfloat16),
        "b2": _pad2(params["b2"], 1, P_H2, jnp.float32),
        "w3": _pad2(params["w3"], P_H2, P_H3, jnp.bfloat16),
        "b3": _pad2(params["b3"], 1, P_H3, jnp.float32),
        "w4": _pad2(params["w4"], P_H3, P_OUT, jnp.bfloat16),
        "b4": _pad2(params["b4"], 1, P_OUT, jnp.float32),
    }


@jax.jit
def mlp_mnist_forward(x, padded_params):
    """x: (B, 784) float32 (or bf16). padded_params: output of prepare_params."""
    B = x.shape[0]
    TB = min(MAX_TB, _round_up(B, 8))
    B_pad = _round_up(B, TB)

    # Pad batch + feature dims; cast activations to bf16 for the MXU.
    x_p = jnp.pad(x, ((0, B_pad - B), (0, P_IN - D_IN))).astype(jnp.bfloat16)

    p = padded_params
    w1, b1 = p["w1"], p["b1"]
    w2, b2 = p["w2"], p["b2"]
    w3, b3 = p["w3"], p["b3"]
    w4, b4 = p["w4"], p["b4"]

    resident = lambda a: pl.BlockSpec(a.shape, lambda i: (0,) * a.ndim,
                                      memory_space=pltpu.MemorySpace.VMEM)

    out_padded = pl.pallas_call(
        mlp_kernel,
        out_shape=jax.ShapeDtypeStruct((B_pad, P_OUT), jnp.float32),
        grid=(B_pad // TB,),
        in_specs=[pl.BlockSpec((TB, P_IN), lambda i: (i, 0),
                               memory_space=pltpu.MemorySpace.VMEM),
                  resident(w1), resident(b1),
                  resident(w2), resident(b2),
                  resident(w3), resident(b3),
                  resident(w4), resident(b4)],
        out_specs=pl.BlockSpec((TB, P_OUT), lambda i: (i, 0),
                               memory_space=pltpu.MemorySpace.VMEM),
        compiler_params=pltpu.CompilerParams(
            dimension_semantics=("parallel",),
            vmem_limit_bytes=32 << 20),
    )(x_p, w1, b1, w2, b2, w3, b3, w4, b4)

    return out_padded[:B, :D_OUT]


def init_params(key):
    """Deterministic init mimicking PyTorch nn.Linear default:
    U(-1/sqrt(fan_in), 1/sqrt(fan_in)) for both weight and bias.
    Weights stored (in, out) so forward is x @ W + b (== x @ W_torch.T + b)."""
    dims = [(D_IN, D_H1), (D_H1, D_H2), (D_H2, D_H3), (D_H3, D_OUT)]
    params = {}
    for i, (fan_in, fan_out) in enumerate(dims, start=1):
        key, kw, kb = jax.random.split(key, 3)
        bound = 1.0 / jnp.sqrt(fan_in)
        params[f"w{i}"] = jax.random.uniform(
            kw, (fan_in, fan_out), jnp.float32, minval=-bound, maxval=bound)
        params[f"b{i}"] = jax.random.uniform(
            kb, (1, fan_out), jnp.float32, minval=-bound, maxval=bound)
    return params


def reference_forward(x, params):
    h = jnp.maximum(x @ params["w1"] + params["b1"], 0.0)
    h = jnp.maximum(h @ params["w2"] + params["b2"], 0.0)
    h = jnp.maximum(h @ params["w3"] + params["b3"], 0.0)
    return h @ params["w4"] + params["b4"]


if __name__ == "__main__":
    key = jax.random.PRNGKey(0)
    key, kx = jax.random.split(key)

    B = 2
    x = jax.random.normal(kx, (B, D_IN), jnp.float32)
    params = init_params(key)
    padded = prepare_params(params)

    y = mlp_mnist_forward(x, padded)
    y = jax.block_until_ready(y)

    y_ref = reference_forward(x, params)
    assert y.shape == (B, D_OUT), y.shape
    # bf16 inputs/weights with f32 accumulation -> loose tolerance vs f32 reference.
    assert jnp.allclose(y, y_ref, atol=5e-2, rtol=5e-2), "mismatch vs reference"

    print("KERNEL_OK")
</pallas_src>

<mosaic_0001>
module attributes {stable_mosaic.version = 11 : i64} {
  func.func @mlp_kernel(%arg0: i32, %arg1: memref<8x896xbf16, #tpu.memory_space<vmem>>, %arg2: memref<896x512xbf16, #tpu.memory_space<vmem>>, %arg3: memref<1x512xf32, #tpu.memory_space<vmem>>, %arg4: memref<512x256xbf16, #tpu.memory_space<vmem>>, %arg5: memref<1x256xf32, #tpu.memory_space<vmem>>, %arg6: memref<256x128xbf16, #tpu.memory_space<vmem>>, %arg7: memref<1x128xf32, #tpu.memory_space<vmem>>, %arg8: memref<128x128xbf16, #tpu.memory_space<vmem>>, %arg9: memref<1x128xf32, #tpu.memory_space<vmem>>, %arg10: memref<8x128xf32, #tpu.memory_space<vmem>>) attributes {dimension_semantics = [#tpu.dimension_semantics<parallel>], iteration_bounds = array<i64: 1>, scalar_prefetch = 0 : i64, scratch_operands = 0 : i64, tpu.core_type = #tpu.core_type<tc>, window_params = [{transform_indices = @transform_0, window_bounds = array<i64: 8, 896>}, {pipeline_mode = #tpu.pipeline_mode<synchronous>, transform_indices = @transform_1, window_bounds = array<i64: 896, 512>}, {pipeline_mode = #tpu.pipeline_mode<synchronous>, transform_indices = @transform_2, window_bounds = array<i64: 1, 512>}, {pipeline_mode = #tpu.pipeline_mode<synchronous>, transform_indices = @transform_3, window_bounds = array<i64: 512, 256>}, {pipeline_mode = #tpu.pipeline_mode<synchronous>, transform_indices = @transform_4, window_bounds = array<i64: 1, 256>}, {pipeline_mode = #tpu.pipeline_mode<synchronous>, transform_indices = @transform_5, window_bounds = array<i64: 256, 128>}, {pipeline_mode = #tpu.pipeline_mode<synchronous>, transform_indices = @transform_6, window_bounds = array<i64: 1, 128>}, {pipeline_mode = #tpu.pipeline_mode<synchronous>, transform_indices = @transform_7, window_bounds = array<i64: 128, 128>}, {pipeline_mode = #tpu.pipeline_mode<synchronous>, transform_indices = @transform_8, window_bounds = array<i64: 1, 128>}, {transform_indices = @transform_9, window_bounds = array<i64: 8, 128>}]} {
    %c0 = arith.constant 0 : index
    %c0_0 = arith.constant 0 : index
    %0 = vector.load %arg1[%c0, %c0_0] : memref<8x896xbf16, #tpu.memory_space<vmem>>, vector<8x896xbf16>
    %c0_1 = arith.constant 0 : index
    %c0_2 = arith.constant 0 : index
    %1 = vector.load %arg2[%c0_1, %c0_2] : memref<896x512xbf16, #tpu.memory_space<vmem>>, vector<896x512xbf16>
    %cst = arith.constant dense<0.000000e+00> : vector<8x512xf32>
    %2 = tpu.matmul %0, %1, %cst {dimension_numbers = #tpu.dot_dimension_numbers<[1], [0], [0], [1], [0, 0, 1, 1], [], []>} : vector<8x896xbf16>, vector<896x512xbf16>, vector<8x512xf32> -> vector<8x512xf32>
    %c0_3 = arith.constant 0 : index
    %c0_4 = arith.constant 0 : index
    %3 = vector.load %arg3[%c0_3, %c0_4] : memref<1x512xf32, #tpu.memory_space<vmem>>, vector<1x512xf32>
    %4 = vector.broadcast %3 : vector<1x512xf32> to vector<8x512xf32>
    %5 = arith.addf %2, %4 : vector<8x512xf32>
    %cst_5 = arith.constant 0.000000e+00 : f32
    %6 = vector.broadcast %cst_5 : f32 to vector<8x512xf32>
    %7 = arith.maximumf %5, %6 : vector<8x512xf32>
    %8 = arith.truncf %7 : vector<8x512xf32> to vector<8x512xbf16>
    %c0_6 = arith.constant 0 : index
    %c0_7 = arith.constant 0 : index
    %9 = vector.load %arg4[%c0_6, %c0_7] : memref<512x256xbf16, #tpu.memory_space<vmem>>, vector<512x256xbf16>
    %cst_8 = arith.constant dense<0.000000e+00> : vector<8x256xf32>
    %10 = tpu.matmul %8, %9, %cst_8 {dimension_numbers = #tpu.dot_dimension_numbers<[1], [0], [0], [1], [0, 0, 1, 1], [], []>} : vector<8x512xbf16>, vector<512x256xbf16>, vector<8x256xf32> -> vector<8x256xf32>
    %c0_9 = arith.constant 0 : index
    %c0_10 = arith.constant 0 : index
    %11 = vector.load %arg5[%c0_9, %c0_10] : memref<1x256xf32, #tpu.memory_space<vmem>>, vector<1x256xf32>
    %12 = vector.broadcast %11 : vector<1x256xf32> to vector<8x256xf32>
    %13 = arith.addf %10, %12 : vector<8x256xf32>
    %cst_11 = arith.constant 0.000000e+00 : f32
    %14 = vector.broadcast %cst_11 : f32 to vector<8x256xf32>
    %15 = arith.maximumf %13, %14 : vector<8x256xf32>
    %16 = arith.truncf %15 : vector<8x256xf32> to vector<8x256xbf16>
    %c0_12 = arith.constant 0 : index
    %c0_13 = arith.constant 0 : index
    %17 = vector.load %arg6[%c0_12, %c0_13] : memref<256x128xbf16, #tpu.memory_space<vmem>>, vector<256x128xbf16>
    %cst_14 = arith.constant dense<0.000000e+00> : vector<8x128xf32>
    %18 = tpu.matmul %16, %17, %cst_14 {dimension_numbers = #tpu.dot_dimension_numbers<[1], [0], [0], [1], [0, 0, 1, 1], [], []>} : vector<8x256xbf16>, vector<256x128xbf16>, vector<8x128xf32> -> vector<8x128xf32>
    %c0_15 = arith.constant 0 : index
    %c0_16 = arith.constant 0 : index
    %19 = vector.load %arg7[%c0_15, %c0_16] : memref<1x128xf32, #tpu.memory_space<vmem>>, vector<1x128xf32>
    %20 = vector.broadcast %19 : vector<1x128xf32> to vector<8x128xf32>
    %21 = arith.addf %18, %20 : vector<8x128xf32>
    %cst_17 = arith.constant 0.000000e+00 : f32
    %22 = vector.broadcast %cst_17 : f32 to vector<8x128xf32>
    %23 = arith.maximumf %21, %22 : vector<8x128xf32>
    %24 = arith.truncf %23 : vector<8x128xf32> to vector<8x128xbf16>
    %c0_18 = arith.constant 0 : index
    %c0_19 = arith.constant 0 : index
    %25 = vector.load %arg8[%c0_18, %c0_19] : memref<128x128xbf16, #tpu.memory_space<vmem>>, vector<128x128xbf16>
    %cst_20 = arith.constant dense<0.000000e+00> : vector<8x128xf32>
    %26 = tpu.matmul %24, %25, %cst_20 {dimension_numbers = #tpu.dot_dimension_numbers<[1], [0], [0], [1], [0, 0, 1, 1], [], []>} : vector<8x128xbf16>, vector<128x128xbf16>, vector<8x128xf32> -> vector<8x128xf32>
    %c0_21 = arith.constant 0 : index
    %c0_22 = arith.constant 0 : index
    %27 = vector.load %arg9[%c0_21, %c0_22] : memref<1x128xf32, #tpu.memory_space<vmem>>, vector<1x128xf32>
    %28 = vector.broadcast %27 : vector<1x128xf32> to vector<8x128xf32>
    %29 = arith.addf %26, %28 : vector<8x128xf32>
    %c0_23 = arith.constant 0 : index
    %c0_24 = arith.constant 0 : index
    %30 = vector.load %arg10[%c0_23, %c0_24] : memref<8x128xf32, #tpu.memory_space<vmem>>, vector<8x128xf32>
    tpu.vector_store %arg10[%c0_23, %c0_24], %29 {strides = array<i32>} : memref<8x128xf32, #tpu.memory_space<vmem>>, vector<8x128xf32>,
    return
  }
  func.func @transform_0(%arg0: i32) -> (i32, i32) {
    %c0_i32 = arith.constant 0 : i32
    %c0_i32_0 = arith.constant 0 : i32
    return %arg0, %c0_i32 : i32, i32
  }
  func.func @transform_1(%arg0: i32) -> (i32, i32) {
    %c0_i32 = arith.constant 0 : i32
    %c0_i32_0 = arith.constant 0 : i32
    %c0_i32_1 = arith.constant 0 : i32
    return %c0_i32, %c0_i32_0 : i32, i32
  }
  func.func @transform_2(%arg0: i32) -> (i32, i32) {
    %c0_i32 = arith.constant 0 : i32
    %c0_i32_0 = arith.constant 0 : i32
    %c0_i32_1 = arith.constant 0 : i32
    return %c0_i32, %c0_i32_0 : i32, i32
  }
  func.func @transform_3(%arg0: i32) -> (i32, i32) {
    %c0_i32 = arith.constant 0 : i32
    %c0_i32_0 = arith.constant 0 : i32
    %c0_i32_1 = arith.constant 0 : i32
    return %c0_i32, %c0_i32_0 : i32, i32
  }
  func.func @transform_4(%arg0: i32) -> (i32, i32) {
    %c0_i32 = arith.constant 0 : i32
    %c0_i32_0 = arith.constant 0 : i32
    %c0_i32_1 = arith.constant 0 : i32
    return %c0_i32, %c0_i32_0 : i32, i32
  }
  func.func @transform_5(%arg0: i32) -> (i32, i32) {
    %c0_i32 = arith.constant 0 : i32
    %c0_i32_0 = arith.constant 0 : i32
    %c0_i32_1 = arith.constant 0 : i32
    return %c0_i32, %c0_i32_0 : i32, i32
  }
  func.func @transform_6(%arg0: i32) -> (i32, i32) {
    %c0_i32 = arith.constant 0 : i32
    %c0_i32_0 = arith.constant 0 : i32
    %c0_i32_1 = arith.constant 0 : i32
    return %c0_i32, %c0_i32_0 : i32, i32
  }
  func.func @transform_7(%arg0: i32) -> (i32, i32) {
    %c0_i32 = arith.constant 0 : i32
    %c0_i32_0 = arith.constant 0 : i32
    %c0_i32_1 = arith.constant 0 : i32
    return %c0_i32, %c0_i32_0 : i32, i32
  }
  func.func @transform_8(%arg0: i32) -> (i32, i32) {
    %c0_i32 = arith.constant 0 : i32
    %c0_i32_0 = arith.constant 0 : i32
    %c0_i32_1 = arith.constant 0 : i32
    return %c0_i32, %c0_i32_0 : i32, i32
  }
  func.func @transform_9(%arg0: i32) -> (i32, i32) {
    %c0_i32 = arith.constant 0 : i32
    %c0_i32_0 = arith.constant 0 : i32
    return %arg0, %c0_i32 : i32, i32
  }
}

</mosaic_0001>

<llo_original>
// kernel: mlp_mnist_forward.1
$region0: #{mlp_mnist_forward.1}
  #allocation0 [shape = 'u32[]', space=smem, size = 0x4, offset = 0x4, fixed_abs, tag = 'smem constant byte address 0x4 - core index']
  #allocation1 [shape = 'u32[144,128]{1,0:T(1,128)}', space=vmem, size = 0x12000, scoped, tag = 'internal scratch']
  %s0 = inlined_call_operand.vmem [shape: bf16[8,896], index: 0, kind: input, shape index: {}]
  %s1 = inlined_call_operand.hbm [shape: bf16[896,512], index: 1, kind: input, shape index: {}]
  %s2 = inlined_call_operand.vmem [shape: f32[1,512], index: 2, kind: input, shape index: {}]
  %s3 = inlined_call_operand.hbm [shape: bf16[512,256], index: 3, kind: input, shape index: {}]
  %s4 = inlined_call_operand.vmem [shape: f32[1,256], index: 4, kind: input, shape index: {}]
  %s5 = inlined_call_operand.hbm [shape: bf16[256,128], index: 5, kind: input, shape index: {}]
  %s6 = inlined_call_operand.vmem [shape: f32[1,128], index: 6, kind: input, shape index: {}]
  %s7 = inlined_call_operand.vmem [shape: bf16[128,128], index: 7, kind: input, shape index: {}]
  %s8 = inlined_call_operand.hbm [shape: f32[1,128], index: 8, kind: input, shape index: {}]
  %s9 = inlined_call_operand.vmem [shape: f32[8,128], index: 9, kind: output, shape index: {}]
  %s10 = sld [smem:[#allocation0]]
  $region62: #{mlp_mnist_forward.1} parent=0
    _
  %s12 = ssub.s32 1, %s10
  %s13 = scalar_select 0, %s12, %s10
  $region1: #{mlp_mnist_forward.1} parent=0
    #allocation2 [shape = 'u8[917504]{0}', space=vmem, size = 0xe0000, scoped, tag = 'input window, operand 1, single buffered']
    #allocation3 [shape = 's32[1]{0}', space=sflag, size = 0x4, scoped, tag = 'scoped memory for mlp_mnist_forward.1']
    #allocation4 [shape = 'u8[262144]{0}', space=vmem, size = 0x40000, scoped, tag = 'input window, operand 3, single buffered']
    #allocation5 [shape = 's32[1]{0}', space=sflag, size = 0x4, scoped, tag = 'scoped memory for mlp_mnist_forward.1']
    #allocation6 [shape = 'u8[65536]{0}', space=vmem, size = 0x10000, scoped, tag = 'input window, operand 5, single buffered']
    #allocation7 [shape = 'u8[512]{0}', space=vmem, size = 0x400, scoped, tag = 'input window, operand 8, single buffered']
    #allocation8 [shape = 's32[1]{0}', space=sflag, size = 0x4, scoped, tag = 'scoped memory for mlp_mnist_forward.1']
    %14 = vsyncpa [#allocation3], 0
    %15 = vsyncpa [#allocation5], 0
    %16 = vsyncpa [#allocation8], 0
    // Predicated region
    $region2: #{mlp_mnist_forward.1} parent=1 // pred_check
      _
    $region3: #{mlp_mnist_forward.1} parent=1 // pred_check_branch
      %18 = sbr.rel (0) target = $region5
    $region4: #{mlp_mnist_forward.1} parent=1 // pred_region
      _
    $region5: #{mlp_mnist_forward.1} parent=1 // pred_fallthru
      _
    // Predicated region
    $region6: #{mlp_mnist_forward.1} parent=1 // pred_check
      _
    $region7: #{mlp_mnist_forward.1} parent=1 // pred_check_branch
      %20 = sbr.rel (0) target = $region9
    $region8: #{mlp_mnist_forward.1} parent=1 // pred_region
      %s22 = ssub.s32 28672, 28672
      %23 = vsyncadd [#allocation3], %s22
      %s24 = sshll.u32 [#allocation2], 4
      %s25 = int_to_ptr.vmem [resolvable:$true] %s24
      %30 = dma.hbm_to_vmem [thread:$0]  %s1, 28672, %s25, [#allocation3], 256, 256, 16
    $region9: #{mlp_mnist_forward.1} parent=1 // pred_fallthru
      _
    // Predicated region
    $region10: #{mlp_mnist_forward.1} parent=1 // pred_check
      _
    $region11: #{mlp_mnist_forward.1} parent=1 // pred_check_branch
      %32 = sbr.rel (0) target = $region13
    $region12: #{mlp_mnist_forward.1} parent=1 // pred_region
      _
    $region13: #{mlp_mnist_forward.1} parent=1 // pred_fallthru
      _
    // Predicated region
    $region14: #{mlp_mnist_forward.1} parent=1 // pred_check
      _
    $region15: #{mlp_mnist_forward.1} parent=1 // pred_check_branch
      %34 = sbr.rel (0) target = $region17
    $region16: #{mlp_mnist_forward.1} parent=1 // pred_region
      %s36 = ssub.s32 8192, 8192
      %37 = vsyncadd [#allocation5], %s36
      %s38 = sshll.u32 [#allocation4], 4
      %s39 = int_to_ptr.vmem [resolvable:$true] %s38
      %44 = dma.hbm_to_vmem [thread:$0]  %s3, 8192, %s39, [#allocation5], 128, 128, 8
    $region17: #{mlp_mnist_forward.1} parent=1 // pred_fallthru
      _
    // Predicated region
    $region18: #{mlp_mnist_forward.1} parent=1 // pred_check
      _
    $region19: #{mlp_mnist_forward.1} parent=1 // pred_check_branch
      %46 = sbr.rel (0) target = $region21
    $region20: #{mlp_mnist_forward.1} parent=1 // pred_region
      _
    $region21: #{mlp_mnist_forward.1} parent=1 // pred_fallthru
      _
    // Predicated region
    $region22: #{mlp_mnist_forward.1} parent=1 // pred_check
      _
    $region23: #{mlp_mnist_forward.1} parent=1 // pred_check_branch
      %48 = sbr.rel (0) target = $region25
    $region24: #{mlp_mnist_forward.1} parent=1 // pred_region
      %s50 = ssub.s32 2048, 2048
      %51 = vsyncadd [#allocation5], %s50
      %s52 = sshll.u32 [#allocation6], 4
      %s53 = int_to_ptr.vmem [resolvable:$true] %s52
      %58 = dma.hbm_to_vmem [thread:$0]  %s5, 2048, %s53, [#allocation5], 64, 64, 4
    $region25: #{mlp_mnist_forward.1} parent=1 // pred_fallthru
      _
    // Predicated region
    $region26: #{mlp_mnist_forward.1} parent=1 // pred_check
      _
    $region27: #{mlp_mnist_forward.1} parent=1 // pred_check_branch
      %60 = sbr.rel (0) target = $region29
    $region28: #{mlp_mnist_forward.1} parent=1 // pred_region
      _
    $region29: #{mlp_mnist_forward.1} parent=1 // pred_fallthru
      _
    // Predicated region
    $region30: #{mlp_mnist_forward.1} parent=1 // pred_check
      _
    $region31: #{mlp_mnist_forward.1} parent=1 // pred_check_branch
      %62 = sbr.rel (0) target = $region33
    $region32: #{mlp_mnist_forward.1} parent=1 // pred_region
      _
    $region33: #{mlp_mnist_forward.1} parent=1 // pred_fallthru
      _
    // Predicated region
    $region34: #{mlp_mnist_forward.1} parent=1 // pred_check
      _
    $region35: #{mlp_mnist_forward.1} parent=1 // pred_check_branch
      %64 = sbr.rel (0) target = $region37
    $region36: #{mlp_mnist_forward.1} parent=1 // pred_region
      %s66 = ssub.s32 16, 16
      %67 = vsyncadd [#allocation8], %s66
      %s69 = sshll.u32 [#allocation7], 4
      %s70 = int_to_ptr.vmem [resolvable:$true] %s69
      %72 = dma.hbm_to_vmem [thread:$0]  %s8, 16, %s70, [#allocation8]
    $region37: #{mlp_mnist_forward.1} parent=1 // pred_fallthru
      _
    // Predicated region
    $region38: #{mlp_mnist_forward.1} parent=1 // pred_check
      _
    $region39: #{mlp_mnist_forward.1} parent=1 // pred_check_branch
      %74 = sbr.rel (0) target = $region41
    $region40: #{mlp_mnist_forward.1} parent=1 // pred_region
      %75 = dma.done [#allocation3], 28672
    $region41: #{mlp_mnist_forward.1} parent=1 // pred_fallthru
      _
    // Predicated region
    $region42: #{mlp_mnist_forward.1} parent=1 // pred_check
      _
    $region43: #{mlp_mnist_forward.1} parent=1 // pred_check_branch
      %77 = sbr.rel (0) target = $region45
    $region44: #{mlp_mnist_forward.1} parent=1 // pred_region
      %78 = dma.done [#allocation5], 8192
    $region45: #{mlp_mnist_forward.1} parent=1 // pred_fallthru
      _
    // Predicated region
    $region46: #{mlp_mnist_forward.1} parent=1 // pred_check
      _
    $region47: #{mlp_mnist_forward.1} parent=1 // pred_check_branch
      %80 = sbr.rel (0) target = $region49
    $region48: #{mlp_mnist_forward.1} parent=1 // pred_region
      %81 = dma.done [#allocation5], 2048
    $region49: #{mlp_mnist_forward.1} parent=1 // pred_fallthru
      _
    // Predicated region
    $region50: #{mlp_mnist_forward.1} parent=1 // pred_check
      _
    $region51: #{mlp_mnist_forward.1} parent=1 // pred_check_branch
      %83 = sbr.rel (0) target = $region53
    $region52: #{mlp_mnist_forward.1} parent=1 // pred_region
      %84 = dma.done [#allocation8], 16
    $region53: #{mlp_mnist_forward.1} parent=1 // pred_fallthru
      _
    %v86 = vld [vmem:[%s0] sm:$0xff]
    %v87 = vld [vmem:[%s0 + $0x8] sm:$0xff]
    %v88 = vld [vmem:[%s0 + $0x10] sm:$0xff]
    %v89 = vld [vmem:[%s0 + $0x18] sm:$0xf]
    %v90 = vld [vmem:[#allocation2] sm:$0xff]
    %v91 = vld [vmem:[#allocation2 + $0x8] sm:$0xff]
    %v92 = vld [vmem:[#allocation2 + $0x10] sm:$0xff]
    %v93 = vld [vmem:[#allocation2 + $0x18] sm:$0xff]
    %v94 = vld [vmem:[#allocation2 + $0x20] sm:$0xff]
    %v95 = vld [vmem:[#allocation2 + $0x28] sm:$0xff]
    %v96 = vld [vmem:[#allocation2 + $0x30] sm:$0xff]
    %v97 = vld [vmem:[#allocation2 + $0x38] sm:$0xff]
    %v98 = vld [vmem:[#allocation2 + $0x40] sm:$0xff]
    %v99 = vld [vmem:[#allocation2 + $0x48] sm:$0xff]
    %v100 = vld [vmem:[#allocation2 + $0x50] sm:$0xff]
    %v101 = vld [vmem:[#allocation2 + $0x58] sm:$0xff]
    %v102 = vld [vmem:[#allocation2 + $0x60] sm:$0xff]
    %v103 = vld [vmem:[#allocation2 + $0x68] sm:$0xff]
    %v104 = vld [vmem:[#allocation2 + $0x70] sm:$0xff]
    %v105 = vld [vmem:[#allocation2 + $0x78] sm:$0xff]
    %v106 = vld [vmem:[#allocation2 + $0x80] sm:$0xff]
    %v107 = vld [vmem:[#allocation2 + $0x88] sm:$0xff]
    %v108 = vld [vmem:[#allocation2 + $0x90] sm:$0xff]
    %v109 = vld [vmem:[#allocation2 + $0x98] sm:$0xff]
    %v110 = vld [vmem:[#allocation2 + $0xa0] sm:$0xff]
    %v111 = vld [vmem:[#allocation2 + $0xa8] sm:$0xff]
    %v112 = vld [vmem:[#allocation2 + $0xb0] sm:$0xff]
    %v113 = vld [vmem:[#allocation2 + $0xb8] sm:$0xff]
    %v114 = vld [vmem:[#allocation2 + $0xc0] sm:$0xff]
    %v115 = vld [vmem:[#allocation2 + $0xc8] sm:$0xff]
    %v116 = vld [vmem:[#allocation2 + $0xd0] sm:$0xff]
    %v117 = vld [vmem:[#allocation2 + $0xd8] sm:$0xff]
    %v118 = vld [vmem:[#allocation2 + $0xe0] sm:$0xff]
    %v119 = vld [vmem:[#allocation2 + $0xe8] sm:$0xff]
    %v120 = vld [vmem:[#allocation2 + $0xf0] sm:$0xff]
    %v121 = vld [vmem:[#allocation2 + $0xf8] sm:$0xff]
    %v122 = vld [vmem:[#allocation2 + $0x100] sm:$0xff]
    %v123 = vld [vmem:[#allocation2 + $0x108] sm:$0xff]
    %v124 = vld [vmem:[#allocation2 + $0x110] sm:$0xff]
    %v125 = vld [vmem:[#allocation2 + $0x118] sm:$0xff]
    %v126 = vld [vmem:[#allocation2 + $0x120] sm:$0xff]
    %v127 = vld [vmem:[#allocation2 + $0x128] sm:$0xff]
    %v128 = vld [vmem:[#allocation2 + $0x130] sm:$0xff]
    %v129 = vld [vmem:[#allocation2 + $0x138] sm:$0xff]
    %v130 = vld [vmem:[#allocation2 + $0x140] sm:$0xff]
    %v131 = vld [vmem:[#allocation2 + $0x148] sm:$0xff]
    %v132 = vld [vmem:[#allocation2 + $0x150] sm:$0xff]
    %v133 = vld [vmem:[#allocation2 + $0x158] sm:$0xff]
    %v134 = vld [vmem:[#allocation2 + $0x160] sm:$0xff]
    %v135 = vld [vmem:[#allocation2 + $0x168] sm:$0xff]
    %v136 = vld [vmem:[#allocation2 + $0x170] sm:$0xff]
    %v137 = vld [vmem:[#allocation2 + $0x178] sm:$0xff]
    %v138 = vld [vmem:[#allocation2 + $0x180] sm:$0xff]
    %v139 = vld [vmem:[#allocation2 + $0x188] sm:$0xff]
    %v140 = vld [vmem:[#allocation2 + $0x190] sm:$0xff]
    %v141 = vld [vmem:[#allocation2 + $0x198] sm:$0xff]
    %v142 = vld [vmem:[#allocation2 + $0x1a0] sm:$0xff]
    %v143 = vld [vmem:[#allocation2 + $0x1a8] sm:$0xff]
    %v144 = vld [vmem:[#allocation2 + $0x1b0] sm:$0xff]
    %v145 = vld [vmem:[#allocation2 + $0x1b8] sm:$0xff]
    %v146 = vld [vmem:[#allocation2 + $0x1c0] sm:$0xff]
    %v147 = vld [vmem:[#allocation2 + $0x1c8] sm:$0xff]
    %v148 = vld [vmem:[#allocation2 + $0x1d0] sm:$0xff]
    %v149 = vld [vmem:[#allocation2 + $0x1d8] sm:$0xff]
    %v150 = vld [vmem:[#allocation2 + $0x1e0] sm:$0xff]
    %v151 = vld [vmem:[#allocation2 + $0x1e8] sm:$0xff]
    %v152 = vld [vmem:[#allocation2 + $0x1f0] sm:$0xff]
    %v153 = vld [vmem:[#allocation2 + $0x1f8] sm:$0xff]
    %v154 = vld [vmem:[#allocation2 + $0x200] sm:$0xff]
    %v155 = vld [vmem:[#allocation2 + $0x208] sm:$0xff]
    %v156 = vld [vmem:[#allocation2 + $0x210] sm:$0xff]
    %v157 = vld [vmem:[#allocation2 + $0x218] sm:$0xff]
    %v158 = vld [vmem:[#allocation2 + $0x220] sm:$0xff]
    %v159 = vld [vmem:[#allocation2 + $0x228] sm:$0xff]
    %v160 = vld [vmem:[#allocation2 + $0x230] sm:$0xff]
    %v161 = vld [vmem:[#allocation2 + $0x238] sm:$0xff]
    %v162 = vld [vmem:[#allocation2 + $0x240] sm:$0xff]
    %v163 = vld [vmem:[#allocation2 + $0x248] sm:$0xff]
    %v164 = vld [vmem:[#allocation2 + $0x250] sm:$0xff]
    %v165 = vld [vmem:[#allocation2 + $0x258] sm:$0xff]
    %v166 = vld [vmem:[#allocation2 + $0x260] sm:$0xff]
    %v167 = vld [vmem:[#allocation2 + $0x268] sm:$0xff]
    %v168 = vld [vmem:[#allocation2 + $0x270] sm:$0xff]
    %v169 = vld [vmem:[#allocation2 + $0x278] sm:$0xff]
    %v170 = vld [vmem:[#allocation2 + $0x280] sm:$0xff]
    %v171 = vld [vmem:[#allocation2 + $0x288] sm:$0xff]
    %v172 = vld [vmem:[#allocation2 + $0x290] sm:$0xff]
    %v173 = vld [vmem:[#allocation2 + $0x298] sm:$0xff]
    %v174 = vld [vmem:[#allocation2 + $0x2a0] sm:$0xff]
    %v175 = vld [vmem:[#allocation2 + $0x2a8] sm:$0xff]
    %v176 = vld [vmem:[#allocation2 + $0x2b0] sm:$0xff]
    %v177 = vld [vmem:[#allocation2 + $0x2b8] sm:$0xff]
    %v178 = vld [vmem:[#allocation2 + $0x2c0] sm:$0xff]
    %v179 = vld [vmem:[#allocation2 + $0x2c8] sm:$0xff]
    %v180 = vld [vmem:[#allocation2 + $0x2d0] sm:$0xff]
    %v181 = vld [vmem:[#allocation2 + $0x2d8] sm:$0xff]
    %v182 = vld [vmem:[#allocation2 + $0x2e0] sm:$0xff]
    %v183 = vld [vmem:[#allocation2 + $0x2e8] sm:$0xff]
    %v184 = vld [vmem:[#allocation2 + $0x2f0] sm:$0xff]
    %v185 = vld [vmem:[#allocation2 + $0x2f8] sm:$0xff]
    %v186 = vld [vmem:[#allocation2 + $0x300] sm:$0xff]
    %v187 = vld [vmem:[#allocation2 + $0x308] sm:$0xff]
    %v188 = vld [vmem:[#allocation2 + $0x310] sm:$0xff]
    %v189 = vld [vmem:[#allocation2 + $0x318] sm:$0xff]
    %v190 = vld [vmem:[#allocation2 + $0x320] sm:$0xff]
    %v191 = vld [vmem:[#allocation2 + $0x328] sm:$0xff]
    %v192 = vld [vmem:[#allocation2 + $0x330] sm:$0xff]
    %v193 = vld [vmem:[#allocation2 + $0x338] sm:$0xff]
    %v194 = vld [vmem:[#allocation2 + $0x340] sm:$0xff]
    %v195 = vld [vmem:[#allocation2 + $0x348] sm:$0xff]
    %v196 = vld [vmem:[#allocation2 + $0x350] sm:$0xff]
    %v197 = vld [vmem:[#allocation2 + $0x358] sm:$0xff]
    %v198 = vld [vmem:[#allocation2 + $0x360] sm:$0xff]
    %v199 = vld [vmem:[#allocation2 + $0x368] sm:$0xff]
    %v200 = vld [vmem:[#allocation2 + $0x370] sm:$0xff]
    %v201 = vld [vmem:[#allocation2 + $0x378] sm:$0xff]
    %v202 = vld [vmem:[#allocation2 + $0x380] sm:$0xff]
    %v203 = vld [vmem:[#allocation2 + $0x388] sm:$0xff]
    %v204 = vld [vmem:[#allocation2 + $0x390] sm:$0xff]
    %v205 = vld [vmem:[#allocation2 + $0x398] sm:$0xff]
    %v206 = vld [vmem:[#allocation2 + $0x3a0] sm:$0xff]
    %v207 = vld [vmem:[#allocation2 + $0x3a8] sm:$0xff]
    %v208 = vld [vmem:[#allocation2 + $0x3b0] sm:$0xff]
    %v209 = vld [vmem:[#allocation2 + $0x3b8] sm:$0xff]
    %v210 = vld [vmem:[#allocation2 + $0x3c0] sm:$0xff]
    %v211 = vld [vmem:[#allocation2 + $0x3c8] sm:$0xff]
    %v212 = vld [vmem:[#allocation2 + $0x3d0] sm:$0xff]
    %v213 = vld [vmem:[#allocation2 + $0x3d8] sm:$0xff]
    %v214 = vld [vmem:[#allocation2 + $0x3e0] sm:$0xff]
    %v215 = vld [vmem:[#allocation2 + $0x3e8] sm:$0xff]
    %v216 = vld [vmem:[#allocation2 + $0x3f0] sm:$0xff]
    %v217 = vld [vmem:[#allocation2 + $0x3f8] sm:$0xff]
    %v218 = vld [vmem:[#allocation2 + $0x400] sm:$0xff]
    %v219 = vld [vmem:[#allocation2 + $0x408] sm:$0xff]
    %v220 = vld [vmem:[#allocation2 + $0x410] sm:$0xff]
    %v221 = vld [vmem:[#allocation2 + $0x418] sm:$0xff]
    %v222 = vld [vmem:[#allocation2 + $0x420] sm:$0xff]
    %v223 = vld [vmem:[#allocation2 + $0x428] sm:$0xff]
    %v224 = vld [vmem:[#allocation2 + $0x430] sm:$0xff]
    %v225 = vld [vmem:[#allocation2 + $0x438] sm:$0xff]
    %v226 = vld [vmem:[#allocation2 + $0x440] sm:$0xff]
    %v227 = vld [vmem:[#allocation2 + $0x448] sm:$0xff]
    %v228 = vld [vmem:[#allocation2 + $0x450] sm:$0xff]
    %v229 = vld [vmem:[#allocation2 + $0x458] sm:$0xff]
    %v230 = vld [vmem:[#allocation2 + $0x460] sm:$0xff]
    %v231 = vld [vmem:[#allocation2 + $0x468] sm:$0xff]
    %v232 = vld [vmem:[#allocation2 + $0x470] sm:$0xff]
    %v233 = vld [vmem:[#allocation2 + $0x478] sm:$0xff]
    %v234 = vld [vmem:[#allocation2 + $0x480] sm:$0xff]
    %v235 = vld [vmem:[#allocation2 + $0x488] sm:$0xff]
    %v236 = vld [vmem:[#allocation2 + $0x490] sm:$0xff]
    %v237 = vld [vmem:[#allocation2 + $0x498] sm:$0xff]
    %v238 = vld [vmem:[#allocation2 + $0x4a0] sm:$0xff]
    %v239 = vld [vmem:[#allocation2 + $0x4a8] sm:$0xff]
    %v240 = vld [vmem:[#allocation2 + $0x4b0] sm:$0xff]
    %v241 = vld [vmem:[#allocation2 + $0x4b8] sm:$0xff]
    %v242 = vld [vmem:[#allocation2 + $0x4c0] sm:$0xff]
    %v243 = vld [vmem:[#allocation2 + $0x4c8] sm:$0xff]
    %v244 = vld [vmem:[#allocation2 + $0x4d0] sm:$0xff]
    %v245 = vld [vmem:[#allocation2 + $0x4d8] sm:$0xff]
    %v246 = vld [vmem:[#allocation2 + $0x4e0] sm:$0xff]
    %v247 = vld [vmem:[#allocation2 + $0x4e8] sm:$0xff]
    %v248 = vld [vmem:[#allocation2 + $0x4f0] sm:$0xff]
    %v249 = vld [vmem:[#allocation2 + $0x4f8] sm:$0xff]
    %v250 = vld [vmem:[#allocation2 + $0x500] sm:$0xff]
    %v251 = vld [vmem:[#allocation2 + $0x508] sm:$0xff]
    %v252 = vld [vmem:[#allocation2 + $0x510] sm:$0xff]
    %v253 = vld [vmem:[#allocation2 + $0x518] sm:$0xff]
    %v254 = vld [vmem:[#allocation2 + $0x520] sm:$0xff]
    %v255 = vld [vmem:[#allocation2 + $0x528] sm:$0xff]
    %v256 = vld [vmem:[#allocation2 + $0x530] sm:$0xff]
    %v257 = vld [vmem:[#allocation2 + $0x538] sm:$0xff]
    %v258 = vld [vmem:[#allocation2 + $0x540] sm:$0xff]
    %v259 = vld [vmem:[#allocation2 + $0x548] sm:$0xff]
    %v260 = vld [vmem:[#allocation2 + $0x550] sm:$0xff]
    %v261 = vld [vmem:[#allocation2 + $0x558] sm:$0xff]
    %v262 = vld [vmem:[#allocation2 + $0x560] sm:$0xff]
    %v263 = vld [vmem:[#allocation2 + $0x568] sm:$0xff]
    %v264 = vld [vmem:[#allocation2 + $0x570] sm:$0xff]
    %v265 = vld [vmem:[#allocation2 + $0x578] sm:$0xff]
    %v266 = vld [vmem:[#allocation2 + $0x580] sm:$0xff]
    %v267 = vld [vmem:[#allocation2 + $0x588] sm:$0xff]
    %v268 = vld [vmem:[#allocation2 + $0x590] sm:$0xff]
    %v269 = vld [vmem:[#allocation2 + $0x598] sm:$0xff]
    %v270 = vld [vmem:[#allocation2 + $0x5a0] sm:$0xff]
    %v271 = vld [vmem:[#allocation2 + $0x5a8] sm:$0xff]
    %v272 = vld [vmem:[#allocation2 + $0x5b0] sm:$0xff]
    %v273 = vld [vmem:[#allocation2 + $0x5b8] sm:$0xff]
    %v274 = vld [vmem:[#allocation2 + $0x5c0] sm:$0xff]
    %v275 = vld [vmem:[#allocation2 + $0x5c8] sm:$0xff]
    %v276 = vld [vmem:[#allocation2 + $0x5d0] sm:$0xff]
    %v277 = vld [vmem:[#allocation2 + $0x5d8] sm:$0xff]
    %v278 = vld [vmem:[#allocation2 + $0x5e0] sm:$0xff]
    %v279 = vld [vmem:[#allocation2 + $0x5e8] sm:$0xff]
    %v280 = vld [vmem:[#allocation2 + $0x5f0] sm:$0xff]
    %v281 = vld [vmem:[#allocation2 + $0x5f8] sm:$0xff]
    %v282 = vld [vmem:[#allocation2 + $0x600] sm:$0xff]
    %v283 = vld [vmem:[#allocation2 + $0x608] sm:$0xff]
    %v284 = vld [vmem:[#allocation2 + $0x610] sm:$0xff]
    %v285 = vld [vmem:[#allocation2 + $0x618] sm:$0xff]
    %v286 = vld [vmem:[#allocation2 + $0x620] sm:$0xff]
    %v287 = vld [vmem:[#allocation2 + $0x628] sm:$0xff]
    %v288 = vld [vmem:[#allocation2 + $0x630] sm:$0xff]
    %v289 = vld [vmem:[#allocation2 + $0x638] sm:$0xff]
    %v290 = vld [vmem:[#allocation2 + $0x640] sm:$0xff]
    %v291 = vld [vmem:[#allocation2 + $0x648] sm:$0xff]
    %v292 = vld [vmem:[#allocation2 + $0x650] sm:$0xff]
    %v293 = vld [vmem:[#allocation2 + $0x658] sm:$0xff]
    %v294 = vld [vmem:[#allocation2 + $0x660] sm:$0xff]
    %v295 = vld [vmem:[#allocation2 + $0x668] sm:$0xff]
    %v296 = vld [vmem:[#allocation2 + $0x670] sm:$0xff]
    %v297 = vld [vmem:[#allocation2 + $0x678] sm:$0xff]
    %v298 = vld [vmem:[#allocation2 + $0x680] sm:$0xff]
    %v299 = vld [vmem:[#allocation2 + $0x688] sm:$0xff]
    %v300 = vld [vmem:[#allocation2 + $0x690] sm:$0xff]
    %v301 = vld [vmem:[#allocation2 + $0x698] sm:$0xff]
    %v302 = vld [vmem:[#allocation2 + $0x6a0] sm:$0xff]
    %v303 = vld [vmem:[#allocation2 + $0x6a8] sm:$0xff]
    %v304 = vld [vmem:[#allocation2 + $0x6b0] sm:$0xff]
    %v305 = vld [vmem:[#allocation2 + $0x6b8] sm:$0xff]
    %v306 = vld [vmem:[#allocation2 + $0x6c0] sm:$0xff]
    %v307 = vld [vmem:[#allocation2 + $0x6c8] sm:$0xff]
    %v308 = vld [vmem:[#allocation2 + $0x6d0] sm:$0xff]
    %v309 = vld [vmem:[#allocation2 + $0x6d8] sm:$0xff]
    %v310 = vld [vmem:[#allocation2 + $0x6e0] sm:$0xff]
    %v311 = vld [vmem:[#allocation2 + $0x6e8] sm:$0xff]
    %v312 = vld [vmem:[#allocation2 + $0x6f0] sm:$0xff]
    %v313 = vld [vmem:[#allocation2 + $0x6f8] sm:$0xff]
    %v314 = vld [vmem:[%s2] sm:$0xf]
    %v316 = vlaneseq
    %v317 = vshrl.u32 %v316, 7
    %v318 = vsub.s32 0, %v317
    %v319 = vrot.slane %v314, %v318
    %v320 = vlaneseq
    %v321 = vshrl.u32 %v320, 7
    %v322 = vsub.s32 1, %v321
    %v323 = vrot.slane %v314, %v322
    %v324 = vlaneseq
    %v325 = vshrl.u32 %v324, 7
    %v326 = vsub.s32 2, %v325
    %v327 = vrot.slane %v314, %v326
    %v328 = vlaneseq
    %v329 = vshrl.u32 %v328, 7
    %v330 = vsub.s32 3, %v329
    %v331 = vrot.slane %v314, %v330
    %v340 = vunpack.c.l.b16 %v86
    %v341 = vunpack.c.h.b16 %v86
    %v342 = vunpack.c.l.b16 %v87
    %v343 = vunpack.c.h.b16 %v87
    %v344 = vunpack.c.l.b16 %v88
    %v345 = vunpack.c.h.b16 %v88
    %v346 = vunpack.c.l.b16 %v89
    %v347 = vpack.c.b16 %v340, %v340
    %v348 = vpack.c.b16 %v341, %v341
    %v349 = vpack.c.b16 %v342, %v342
    %v350 = vpack.c.b16 %v343, %v343
    %v351 = vpack.c.b16 %v344, %v344
    %v352 = vpack.c.b16 %v345, %v345
    %v353 = vpack.c.b16 %v346, %v346
    %v585 = vunpack.c.l.b16 %v90
    %v586 = vunpack.c.h.b16 %v90
    %v587 = vunpack.c.l.b16 %v91
    %v588 = vunpack.c.h.b16 %v91
    %v589 = vunpack.c.l.b16 %v92
    %v590 = vunpack.c.h.b16 %v92
    %v591 = vunpack.c.l.b16 %v93
    %v592 = vunpack.c.h.b16 %v93
    %v593 = vunpack.c.l.b16 %v94
    %v594 = vunpack.c.h.b16 %v94
    %v595 = vunpack.c.l.b16 %v95
    %v596 = vunpack.c.h.b16 %v95
    %v597 = vunpack.c.l.b16 %v96
    %v598 = vunpack.c.h.b16 %v96
    %v599 = vunpack.c.l.b16 %v97
    %v600 = vunpack.c.h.b16 %v97
    %v601 = vunpack.c.l.b16 %v98
    %v602 = vunpack.c.h.b16 %v98
    %v603 = vunpack.c.l.b16 %v99
    %v604 = vunpack.c.h.b16 %v99
    %v605 = vunpack.c.l.b16 %v100
    %v606 = vunpack.c.h.b16 %v100
    %v607 = vunpack.c.l.b16 %v101
    %v608 = vunpack.c.h.b16 %v101
    %v609 = vunpack.c.l.b16 %v102
    %v610 = vunpack.c.h.b16 %v102
    %v611 = vunpack.c.l.b16 %v103
    %v612 = vunpack.c.h.b16 %v103
    %v613 = vunpack.c.l.b16 %v104
    %v614 = vunpack.c.h.b16 %v104
    %v615 = vunpack.c.l.b16 %v105
    %v616 = vunpack.c.h.b16 %v105
    %v617 = vunpack.c.l.b16 %v106
    %v618 = vunpack.c.h.b16 %v106
    %v619 = vunpack.c.l.b16 %v107
    %v620 = vunpack.c.h.b16 %v107
    %v621 = vunpack.c.l.b16 %v108
    %v622 = vunpack.c.h.b16 %v108
    %v623 = vunpack.c.l.b16 %v109
    %v624 = vunpack.c.h.b16 %v109
    %v625 = vunpack.c.l.b16 %v110
    %v626 = vunpack.c.h.b16 %v110
    %v627 = vunpack.c.l.b16 %v111
    %v628 = vunpack.c.h.b16 %v111
    %v629 = vunpack.c.l.b16 %v112
    %v630 = vunpack.c.h.b16 %v112
    %v631 = vunpack.c.l.b16 %v113
    %v632 = vunpack.c.h.b16 %v113
    %v633 = vunpack.c.l.b16 %v114
    %v634 = vunpack.c.h.b16 %v114
    %v635 = vunpack.c.l.b16 %v115
    %v636 = vunpack.c.h.b16 %v115
    %v637 = vunpack.c.l.b16 %v116
    %v638 = vunpack.c.h.b16 %v116
    %v639 = vunpack.c.l.b16 %v117
    %v640 = vunpack.c.h.b16 %v117
    %v641 = vunpack.c.l.b16 %v118
    %v642 = vunpack.c.h.b16 %v118
    %v643 = vunpack.c.l.b16 %v119
    %v644 = vunpack.c.h.b16 %v119
    %v645 = vunpack.c.l.b16 %v120
    %v646 = vunpack.c.h.b16 %v120
    %v647 = vunpack.c.l.b16 %v121
    %v648 = vunpack.c.h.b16 %v121
    %v649 = vunpack.c.l.b16 %v122
    %v650 = vunpack.c.h.b16 %v122
    %v651 = vunpack.c.l.b16 %v123
    %v652 = vunpack.c.h.b16 %v123
    %v653 = vunpack.c.l.b16 %v124
    %v654 = vunpack.c.h.b16 %v124
    %v655 = vunpack.c.l.b16 %v125
    %v656 = vunpack.c.h.b16 %v125
    %v657 = vunpack.c.l.b16 %v126
    %v658 = vunpack.c.h.b16 %v126
    %v659 = vunpack.c.l.b16 %v127
    %v660 = vunpack.c.h.b16 %v127
    %v661 = vunpack.c.l.b16 %v128
    %v662 = vunpack.c.h.b16 %v128
    %v663 = vunpack.c.l.b16 %v129
    %v664 = vunpack.c.h.b16 %v129
    %v665 = vunpack.c.l.b16 %v130
    %v666 = vunpack.c.h.b16 %v130
    %v667 = vunpack.c.l.b16 %v131
    %v668 = vunpack.c.h.b16 %v131
    %v669 = vunpack.c.l.b16 %v132
    %v670 = vunpack.c.h.b16 %v132
    %v671 = vunpack.c.l.b16 %v133
    %v672 = vunpack.c.h.b16 %v133
    %v673 = vunpack.c.l.b16 %v134
    %v674 = vunpack.c.h.b16 %v134
    %v675 = vunpack.c.l.b16 %v135
    %v676 = vunpack.c.h.b16 %v135
    %v677 = vunpack.c.l.b16 %v136
    %v678 = vunpack.c.h.b16 %v136
    %v679 = vunpack.c.l.b16 %v137
    %v680 = vunpack.c.h.b16 %v137
    %v681 = vunpack.c.l.b16 %v138
    %v682 = vunpack.c.h.b16 %v138
    %v683 = vunpack.c.l.b16 %v139
    %v684 = vunpack.c.h.b16 %v139
    %v685 = vunpack.c.l.b16 %v140
    %v686 = vunpack.c.h.b16 %v140
    %v687 = vunpack.c.l.b16 %v141
    %v688 = vunpack.c.h.b16 %v141
    %v689 = vunpack.c.l.b16 %v142
    %v690 = vunpack.c.h.b16 %v142
    %v691 = vunpack.c.l.b16 %v143
    %v692 = vunpack.c.h.b16 %v143
    %v693 = vunpack.c.l.b16 %v144
    %v694 = vunpack.c.h.b16 %v144
    %v695 = vunpack.c.l.b16 %v145
    %v696 = vunpack.c.h.b16 %v145
    %v697 = vunpack.c.l.b16 %v146
    %v698 = vunpack.c.h.b16 %v146
    %v699 = vunpack.c.l.b16 %v147
    %v700 = vunpack.c.h.b16 %v147
    %v701 = vunpack.c.l.b16 %v148
    %v702 = vunpack.c.h.b16 %v148
    %v703 = vunpack.c.l.b16 %v149
    %v704 = vunpack.c.h.b16 %v149
    %v705 = vunpack.c.l.b16 %v150
    %v706 = vunpack.c.h.b16 %v150
    %v707 = vunpack.c.l.b16 %v151
    %v708 = vunpack.c.h.b16 %v151
    %v709 = vunpack.c.l.b16 %v152
    %v710 = vunpack.c.h.b16 %v152
    %v711 = vunpack.c.l.b16 %v153
    %v712 = vunpack.c.h.b16 %v153
    %v713 = vunpack.c.l.b16 %v154
    %v714 = vunpack.c.h.b16 %v154
    %v715 = vunpack.c.l.b16 %v155
    %v716 = vunpack.c.h.b16 %v155
    %v717 = vunpack.c.l.b16 %v156
    %v718 = vunpack.c.h.b16 %v156
    %v719 = vunpack.c.l.b16 %v157
    %v720 = vunpack.c.h.b16 %v157
    %v721 = vunpack.c.l.b16 %v158
    %v722 = vunpack.c.h.b16 %v158
    %v723 = vunpack.c.l.b16 %v159
    %v724 = vunpack.c.h.b16 %v159
    %v725 = vunpack.c.l.b16 %v160
    %v726 = vunpack.c.h.b16 %v160
    %v727 = vunpack.c.l.b16 %v161
    %v728 = vunpack.c.h.b16 %v161
    %v729 = vunpack.c.l.b16 %v162
    %v730 = vunpack.c.h.b16 %v162
    %v731 = vunpack.c.l.b16 %v163
    %v732 = vunpack.c.h.b16 %v163
    %v733 = vunpack.c.l.b16 %v164
    %v734 = vunpack.c.h.b16 %v164
    %v735 = vunpack.c.l.b16 %v165
    %v736 = vunpack.c.h.b16 %v165
    %v737 = vunpack.c.l.b16 %v166
    %v738 = vunpack.c.h.b16 %v166
    %v739 = vunpack.c.l.b16 %v167
    %v740 = vunpack.c.h.b16 %v167
    %v741 = vunpack.c.l.b16 %v168
    %v742 = vunpack.c.h.b16 %v168
    %v743 = vunpack.c.l.b16 %v169
    %v744 = vunpack.c.h.b16 %v169
    %v745 = vunpack.c.l.b16 %v170
    %v746 = vunpack.c.h.b16 %v170
    %v747 = vunpack.c.l.b16 %v171
    %v748 = vunpack.c.h.b16 %v171
    %v749 = vunpack.c.l.b16 %v172
    %v750 = vunpack.c.h.b16 %v172
    %v751 = vunpack.c.l.b16 %v173
    %v752 = vunpack.c.h.b16 %v173
    %v753 = vunpack.c.l.b16 %v174
    %v754 = vunpack.c.h.b16 %v174
    %v755 = vunpack.c.l.b16 %v175
    %v756 = vunpack.c.h.b16 %v175
    %v757 = vunpack.c.l.b16 %v176
    %v758 = vunpack.c.h.b16 %v176
    %v759 = vunpack.c.l.b16 %v177
    %v760 = vunpack.c.h.b16 %v177
    %v761 = vunpack.c.l.b16 %v178
    %v762 = vunpack.c.h.b16 %v178
    %v763 = vunpack.c.l.b16 %v179
    %v764 = vunpack.c.h.b16 %v179
    %v765 = vunpack.c.l.b16 %v180
    %v766 = vunpack.c.h.b16 %v180
    %v767 = vunpack.c.l.b16 %v181
    %v768 = vunpack.c.h.b16 %v181
    %v769 = vunpack.c.l.b16 %v182
    %v770 = vunpack.c.h.b16 %v182
    %v771 = vunpack.c.l.b16 %v183
    %v772 = vunpack.c.h.b16 %v183
    %v773 = vunpack.c.l.b16 %v184
    %v774 = vunpack.c.h.b16 %v184
    %v775 = vunpack.c.l.b16 %v185
    %v776 = vunpack.c.h.b16 %v185
    %v777 = vunpack.c.l.b16 %v186
    %v778 = vunpack.c.h.b16 %v186
    %v779 = vunpack.c.l.b16 %v187
    %v780 = vunpack.c.h.b16 %v187
    %v781 = vunpack.c.l.b16 %v188
    %v782 = vunpack.c.h.b16 %v188
    %v783 = vunpack.c.l.b16 %v189
    %v784 = vunpack.c.h.b16 %v189
    %v785 = vunpack.c.l.b16 %v190
    %v786 = vunpack.c.h.b16 %v190
    %v787 = vunpack.c.l.b16 %v191
    %v788 = vunpack.c.h.b16 %v191
    %v789 = vunpack.c.l.b16 %v192
    %v790 = vunpack.c.h.b16 %v192
    %v791 = vunpack.c.l.b16 %v193
    %v792 = vunpack.c.h.b16 %v193
    %v793 = vunpack.c.l.b16 %v194
    %v794 = vunpack.c.h.b16 %v194
    %v795 = vunpack.c.l.b16 %v195
    %v796 = vunpack.c.h.b16 %v195
    %v797 = vunpack.c.l.b16 %v196
    %v798 = vunpack.c.h.b16 %v196
    %v799 = vunpack.c.l.b16 %v197
    %v800 = vunpack.c.h.b16 %v197
    %v801 = vunpack.c.l.b16 %v198
    %v802 = vunpack.c.h.b16 %v198
    %v803 = vunpack.c.l.b16 %v199
    %v804 = vunpack.c.h.b16 %v199
    %v805 = vunpack.c.l.b16 %v200
    %v806 = vunpack.c.h.b16 %v200
    %v807 = vunpack.c.l.b16 %v201
    %v808 = vunpack.c.h.b16 %v201
    %v809 = vunpack.c.l.b16 %v202
    %v810 = vunpack.c.h.b16 %v202
    %v811 = vunpack.c.l.b16 %v203
    %v812 = vunpack.c.h.b16 %v203
    %v813 = vunpack.c.l.b16 %v204
    %v814 = vunpack.c.h.b16 %v204
    %v815 = vunpack.c.l.b16 %v205
    %v816 = vunpack.c.h.b16 %v205
    %v817 = vunpack.c.l.b16 %v206
    %v818 = vunpack.c.h.b16 %v206
    %v819 = vunpack.c.l.b16 %v207
    %v820 = vunpack.c.h.b16 %v207
    %v821 = vunpack.c.l.b16 %v208
    %v822 = vunpack.c.h.b16 %v208
    %v823 = vunpack.c.l.b16 %v209
    %v824 = vunpack.c.h.b16 %v209
    %v825 = vunpack.c.l.b16 %v210
    %v826 = vunpack.c.h.b16 %v210
    %v827 = vunpack.c.l.b16 %v211
    %v828 = vunpack.c.h.b16 %v211
    %v829 = vunpack.c.l.b16 %v212
    %v830 = vunpack.c.h.b16 %v212
    %v831 = vunpack.c.l.b16 %v213
    %v832 = vunpack.c.h.b16 %v213
    %v833 = vunpack.c.l.b16 %v214
    %v834 = vunpack.c.h.b16 %v214
    %v835 = vunpack.c.l.b16 %v215
    %v836 = vunpack.c.h.b16 %v215
    %v837 = vunpack.c.l.b16 %v216
    %v838 = vunpack.c.h.b16 %v216
    %v839 = vunpack.c.l.b16 %v217
    %v840 = vunpack.c.h.b16 %v217
    %v841 = vunpack.c.l.b16 %v218
    %v842 = vunpack.c.h.b16 %v218
    %v843 = vunpack.c.l.b16 %v219
    %v844 = vunpack.c.h.b16 %v219
    %v845 = vunpack.c.l.b16 %v220
    %v846 = vunpack.c.h.b16 %v220
    %v847 = vunpack.c.l.b16 %v221
    %v848 = vunpack.c.h.b16 %v221
    %v849 = vunpack.c.l.b16 %v222
    %v850 = vunpack.c.h.b16 %v222
    %v851 = vunpack.c.l.b16 %v223
    %v852 = vunpack.c.h.b16 %v223
    %v853 = vunpack.c.l.b16 %v224
    %v854 = vunpack.c.h.b16 %v224
    %v855 = vunpack.c.l.b16 %v225
    %v856 = vunpack.c.h.b16 %v225
    %v857 = vunpack.c.l.b16 %v226
    %v858 = vunpack.c.h.b16 %v226
    %v859 = vunpack.c.l.b16 %v227
    %v860 = vunpack.c.h.b16 %v227
    %v861 = vunpack.c.l.b16 %v228
    %v862 = vunpack.c.h.b16 %v228
    %v863 = vunpack.c.l.b16 %v229
    %v864 = vunpack.c.h.b16 %v229
    %v865 = vunpack.c.l.b16 %v230
    %v866 = vunpack.c.h.b16 %v230
    %v867 = vunpack.c.l.b16 %v231
    %v868 = vunpack.c.h.b16 %v231
    %v869 = vunpack.c.l.b16 %v232
    %v870 = vunpack.c.h.b16 %v232
    %v871 = vunpack.c.l.b16 %v233
    %v872 = vunpack.c.h.b16 %v233
    %v873 = vunpack.c.l.b16 %v234
    %v874 = vunpack.c.h.b16 %v234
    %v875 = vunpack.c.l.b16 %v235
    %v876 = vunpack.c.h.b16 %v235
    %v877 = vunpack.c.l.b16 %v236
    %v878 = vunpack.c.h.b16 %v236
    %v879 = vunpack.c.l.b16 %v237
    %v880 = vunpack.c.h.b16 %v237
    %v881 = vunpack.c.l.b16 %v238
    %v882 = vunpack.c.h.b16 %v238
    %v883 = vunpack.c.l.b16 %v239
    %v884 = vunpack.c.h.b16 %v239
    %v885 = vunpack.c.l.b16 %v240
    %v886 = vunpack.c.h.b16 %v240
    %v887 = vunpack.c.l.b16 %v241
    %v888 = vunpack.c.h.b16 %v241
    %v889 = vunpack.c.l.b16 %v242
    %v890 = vunpack.c.h.b16 %v242
    %v891 = vunpack.c.l.b16 %v243
    %v892 = vunpack.c.h.b16 %v243
    %v893 = vunpack.c.l.b16 %v244
    %v894 = vunpack.c.h.b16 %v244
    %v895 = vunpack.c.l.b16 %v245
    %v896 = vunpack.c.h.b16 %v245
    %v897 = vunpack.c.l.b16 %v246
    %v898 = vunpack.c.h.b16 %v246
    %v899 = vunpack.c.l.b16 %v247
    %v900 = vunpack.c.h.b16 %v247
    %v901 = vunpack.c.l.b16 %v248
    %v902 = vunpack.c.h.b16 %v248
    %v903 = vunpack.c.l.b16 %v249
    %v904 = vunpack.c.h.b16 %v249
    %v905 = vunpack.c.l.b16 %v250
    %v906 = vunpack.c.h.b16 %v250
    %v907 = vunpack.c.l.b16 %v251
    %v908 = vunpack.c.h.b16 %v251
    %v909 = vunpack.c.l.b16 %v252
    %v910 = vunpack.c.h.b16 %v252
    %v911 = vunpack.c.l.b16 %v253
    %v912 = vunpack.c.h.b16 %v253
    %v913 = vunpack.c.l.b16 %v254
    %v914 = vunpack.c.h.b16 %v254
    %v915 = vunpack.c.l.b16 %v255
    %v916 = vunpack.c.h.b16 %v255
    %v917 = vunpack.c.l.b16 %v256
    %v918 = vunpack.c.h.b16 %v256
    %v919 = vunpack.c.l.b16 %v257
    %v920 = vunpack.c.h.b16 %v257
    %v921 = vunpack.c.l.b16 %v258
    %v922 = vunpack.c.h.b16 %v258
    %v923 = vunpack.c.l.b16 %v259
    %v924 = vunpack.c.h.b16 %v259
    %v925 = vunpack.c.l.b16 %v260
    %v926 = vunpack.c.h.b16 %v260
    %v927 = vunpack.c.l.b16 %v261
    %v928 = vunpack.c.h.b16 %v261
    %v929 = vunpack.c.l.b16 %v262
    %v930 = vunpack.c.h.b16 %v262
    %v931 = vunpack.c.l.b16 %v263
    %v932 = vunpack.c.h.b16 %v263
    %v933 = vunpack.c.l.b16 %v264
    %v934 = vunpack.c.h.b16 %v264
    %v935 = vunpack.c.l.b16 %v265
    %v936 = vunpack.c.h.b16 %v265
    %v937 = vunpack.c.l.b16 %v266
    %v938 = vunpack.c.h.b16 %v266
    %v939 = vunpack.c.l.b16 %v267
    %v940 = vunpack.c.h.b16 %v267
    %v941 = vunpack.c.l.b16 %v268
    %v942 = vunpack.c.h.b16 %v268
    %v943 = vunpack.c.l.b16 %v269
    %v944 = vunpack.c.h.b16 %v269
    %v945 = vunpack.c.l.b16 %v270
    %v946 = vunpack.c.h.b16 %v270
    %v947 = vunpack.c.l.b16 %v271
    %v948 = vunpack.c.h.b16 %v271
    %v949 = vunpack.c.l.b16 %v272
    %v950 = vunpack.c.h.b16 %v272
    %v951 = vunpack.c.l.b16 %v273
    %v952 = vunpack.c.h.b16 %v273
    %v953 = vunpack.c.l.b16 %v274
    %v954 = vunpack.c.h.b16 %v274
    %v955 = vunpack.c.l.b16 %v275
    %v956 = vunpack.c.h.b16 %v275
    %v957 = vunpack.c.l.b16 %v276
    %v958 = vunpack.c.h.b16 %v276
    %v959 = vunpack.c.l.b16 %v277
    %v960 = vunpack.c.h.b16 %v277
    %v961 = vunpack.c.l.b16 %v278
    %v962 = vunpack.c.h.b16 %v278
    %v963 = vunpack.c.l.b16 %v279
    %v964 = vunpack.c.h.b16 %v279
    %v965 = vunpack.c.l.b16 %v280
    %v966 = vunpack.c.h.b16 %v280
    %v967 = vunpack.c.l.b16 %v281
    %v968 = vunpack.c.h.b16 %v281
    %v969 = vunpack.c.l.b16 %v282
    %v970 = vunpack.c.h.b16 %v282
    %v971 = vunpack.c.l.b16 %v283
    %v972 = vunpack.c.h.b16 %v283
    %v973 = vunpack.c.l.b16 %v284
    %v974 = vunpack.c.h.b16 %v284
    %v975 = vunpack.c.l.b16 %v285
    %v976 = vunpack.c.h.b16 %v285
    %v977 = vunpack.c.l.b16 %v286
    %v978 = vunpack.c.h.b16 %v286
    %v979 = vunpack.c.l.b16 %v287
    %v980 = vunpack.c.h.b16 %v287
    %v981 = vunpack.c.l.b16 %v288
    %v982 = vunpack.c.h.b16 %v288
    %v983 = vunpack.c.l.b16 %v289
    %v984 = vunpack.c.h.b16 %v289
    %v985 = vunpack.c.l.b16 %v290
    %v986 = vunpack.c.h.b16 %v290
    %v987 = vunpack.c.l.b16 %v291
    %v988 = vunpack.c.h.b16 %v291
    %v989 = vunpack.c.l.b16 %v292
    %v990 = vunpack.c.h.b16 %v292
    %v991 = vunpack.c.l.b16 %v293
    %v992 = vunpack.c.h.b16 %v293
    %v993 = vunpack.c.l.b16 %v294
    %v994 = vunpack.c.h.b16 %v294
    %v995 = vunpack.c.l.b16 %v295
    %v996 = vunpack.c.h.b16 %v295
    %v997 = vunpack.c.l.b16 %v296
    %v998 = vunpack.c.h.b16 %v296
    %v999 = vunpack.c.l.b16 %v297
    %v1000 = vunpack.c.h.b16 %v297
    %v1001 = vunpack.c.l.b16 %v298
    %v1002 = vunpack.c.h.b16 %v298
    %v1003 = vunpack.c.l.b16 %v299
    %v1004 = vunpack.c.h.b16 %v299
    %v1005 = vunpack.c.l.b16 %v300
    %v1006 = vunpack.c.h.b16 %v300
    %v1007 = vunpack.c.l.b16 %v301
    %v1008 = vunpack.c.h.b16 %v301
    %v1009 = vunpack.c.l.b16 %v302
    %v1010 = vunpack.c.h.b16 %v302
    %v1011 = vunpack.c.l.b16 %v303
    %v1012 = vunpack.c.h.b16 %v303
    %v1013 = vunpack.c.l.b16 %v304
    %v1014 = vunpack.c.h.b16 %v304
    %v1015 = vunpack.c.l.b16 %v305
    %v1016 = vunpack.c.h.b16 %v305
    %v1017 = vunpack.c.l.b16 %v306
    %v1018 = vunpack.c.h.b16 %v306
    %v1019 = vunpack.c.l.b16 %v307
    %v1020 = vunpack.c.h.b16 %v307
    %v1021 = vunpack.c.l.b16 %v308
    %v1022 = vunpack.c.h.b16 %v308
    %v1023 = vunpack.c.l.b16 %v309
    %v1024 = vunpack.c.h.b16 %v309
    %v1025 = vunpack.c.l.b16 %v310
    %v1026 = vunpack.c.h.b16 %v310
    %v1027 = vunpack.c.l.b16 %v311
    %v1028 = vunpack.c.h.b16 %v311
    %v1029 = vunpack.c.l.b16 %v312
    %v1030 = vunpack.c.h.b16 %v312
    %v1031 = vunpack.c.l.b16 %v313
    %v1032 = vunpack.c.h.b16 %v313
    %v1033 = vpack.c.b16 %v589, %v585
    %v1034 = vpack.c.b16 %v590, %v586
    %v1035 = vpack.c.b16 %v591, %v587
    %v1036 = vpack.c.b16 %v592, %v588
    %v1037 = vpack.c.b16 %v597, %v593
    %v1038 = vpack.c.b16 %v598, %v594
    %v1039 = vpack.c.b16 %v599, %v595
    %v1040 = vpack.c.b16 %v600, %v596
    %v1041 = vpack.c.b16 %v605, %v601
    %v1042 = vpack.c.b16 %v606, %v602
    %v1043 = vpack.c.b16 %v607, %v603
    %v1044 = vpack.c.b16 %v608, %v604
    %v1045 = vpack.c.b16 %v613, %v609
    %v1046 = vpack.c.b16 %v614, %v610
    %v1047 = vpack.c.b16 %v615, %v611
    %v1048 = vpack.c.b16 %v616, %v612
    %v1049 = vpack.c.b16 %v621, %v617
    %v1050 = vpack.c.b16 %v622, %v618
    %v1051 = vpack.c.b16 %v623, %v619
    %v1052 = vpack.c.b16 %v624, %v620
    %v1053 = vpack.c.b16 %v629, %v625
    %v1054 = vpack.c.b16 %v630, %v626
    %v1055 = vpack.c.b16 %v631, %v627
    %v1056 = vpack.c.b16 %v632, %v628
    %v1057 = vpack.c.b16 %v637, %v633
    %v1058 = vpack.c.b16 %v638, %v634
    %v1059 = vpack.c.b16 %v639, %v635
    %v1060 = vpack.c.b16 %v640, %v636
    %v1061 = vpack.c.b16 %v645, %v641
    %v1062 = vpack.c.b16 %v646, %v642
    %v1063 = vpack.c.b16 %v647, %v643
    %v1064 = vpack.c.b16 %v648, %v644
    %v1065 = vpack.c.b16 %v653, %v649
    %v1066 = vpack.c.b16 %v654, %v650
    %v1067 = vpack.c.b16 %v655, %v651
    %v1068 = vpack.c.b16 %v656, %v652
    %v1069 = vpack.c.b16 %v661, %v657
    %v1070 = vpack.c.b16 %v662, %v658
    %v1071 = vpack.c.b16 %v663, %v659
    %v1072 = vpack.c.b16 %v664, %v660
    %v1073 = vpack.c.b16 %v669, %v665
    %v1074 = vpack.c.b16 %v670, %v666
    %v1075 = vpack.c.b16 %v671, %v667
    %v1076 = vpack.c.b16 %v672, %v668
    %v1077 = vpack.c.b16 %v677, %v673
    %v1078 = vpack.c.b16 %v678, %v674
    %v1079 = vpack.c.b16 %v679, %v675
    %v1080 = vpack.c.b16 %v680, %v676
    %v1081 = vpack.c.b16 %v685, %v681
    %v1082 = vpack.c.b16 %v686, %v682
    %v1083 = vpack.c.b16 %v687, %v683
    %v1084 = vpack.c.b16 %v688, %v684
    %v1085 = vpack.c.b16 %v693, %v689
    %v1086 = vpack.c.b16 %v694, %v690
    %v1087 = vpack.c.b16 %v695, %v691
    %v1088 = vpack.c.b16 %v696, %v692
    %v1089 = vpack.c.b16 %v701, %v697
    %v1090 = vpack.c.b16 %v702, %v698
    %v1091 = vpack.c.b16 %v703, %v699
    %v1092 = vpack.c.b16 %v704, %v700
    %v1093 = vpack.c.b16 %v709, %v705
    %v1094 = vpack.c.b16 %v710, %v706
    %v1095 = vpack.c.b16 %v711, %v707
    %v1096 = vpack.c.b16 %v712, %v708
    %v1097 = vpack.c.b16 %v717, %v713
    %v1098 = vpack.c.b16 %v718, %v714
    %v1099 = vpack.c.b16 %v719, %v715
    %v1100 = vpack.c.b16 %v720, %v716
    %v1101 = vpack.c.b16 %v725, %v721
    %v1102 = vpack.c.b16 %v726, %v722
    %v1103 = vpack.c.b16 %v727, %v723
    %v1104 = vpack.c.b16 %v728, %v724
    %v1105 = vpack.c.b16 %v733, %v729
    %v1106 = vpack.c.b16 %v734, %v730
    %v1107 = vpack.c.b16 %v735, %v731
    %v1108 = vpack.c.b16 %v736, %v732
    %v1109 = vpack.c.b16 %v741, %v737
    %v1110 = vpack.c.b16 %v742, %v738
    %v1111 = vpack.c.b16 %v743, %v739
    %v1112 = vpack.c.b16 %v744, %v740
    %v1113 = vpack.c.b16 %v749, %v745
    %v1114 = vpack.c.b16 %v750, %v746
    %v1115 = vpack.c.b16 %v751, %v747
    %v1116 = vpack.c.b16 %v752, %v748
    %v1117 = vpack.c.b16 %v757, %v753
    %v1118 = vpack.c.b16 %v758, %v754
    %v1119 = vpack.c.b16 %v759, %v755
    %v1120 = vpack.c.b16 %v760, %v756
    %v1121 = vpack.c.b16 %v765, %v761
    %v1122 = vpack.c.b16 %v766, %v762
    %v1123 = vpack.c.b16 %v767, %v763
    %v1124 = vpack.c.b16 %v768, %v764
    %v1125 = vpack.c.b16 %v773, %v769
    %v1126 = vpack.c.b16 %v774, %v770
    %v1127 = vpack.c.b16 %v775, %v771
    %v1128 = vpack.c.b16 %v776, %v772
    %v1129 = vpack.c.b16 %v781, %v777
    %v1130 = vpack.c.b16 %v782, %v778
    %v1131 = vpack.c.b16 %v783, %v779
    %v1132 = vpack.c.b16 %v784, %v780
    %v1133 = vpack.c.b16 %v789, %v785
    %v1134 = vpack.c.b16 %v790, %v786
    %v1135 = vpack.c.b16 %v791, %v787
    %v1136 = vpack.c.b16 %v792, %v788
    %v1137 = vpack.c.b16 %v797, %v793
    %v1138 = vpack.c.b16 %v798, %v794
    %v1139 = vpack.c.b16 %v799, %v795
    %v1140 = vpack.c.b16 %v800, %v796
    %v1141 = vpack.c.b16 %v805, %v801
    %v1142 = vpack.c.b16 %v806, %v802
    %v1143 = vpack.c.b16 %v807, %v803
    %v1144 = vpack.c.b16 %v808, %v804
    %v1145 = vpack.c.b16 %v813, %v809
    %v1146 = vpack.c.b16 %v814, %v810
    %v1147 = vpack.c.b16 %v815, %v811
    %v1148 = vpack.c.b16 %v816, %v812
    %v1149 = vpack.c.b16 %v821, %v817
    %v1150 = vpack.c.b16 %v822, %v818
    %v1151 = vpack.c.b16 %v823, %v819
    %v1152 = vpack.c.b16 %v824, %v820
    %v1153 = vpack.c.b16 %v829, %v825
    %v1154 = vpack.c.b16 %v830, %v826
    %v1155 = vpack.c.b16 %v831, %v827
    %v1156 = vpack.c.b16 %v832, %v828
    %v1157 = vpack.c.b16 %v837, %v833
    %v1158 = vpack.c.b16 %v838, %v834
    %v1159 = vpack.c.b16 %v839, %v835
    %v1160 = vpack.c.b16 %v840, %v836
    %v1161 = vpack.c.b16 %v845, %v841
    %v1162 = vpack.c.b16 %v846, %v842
    %v1163 = vpack.c.b16 %v847, %v843
    %v1164 = vpack.c.b16 %v848, %v844
    %v1165 = vpack.c.b16 %v853, %v849
    %v1166 = vpack.c.b16 %v854, %v850
    %v1167 = vpack.c.b16 %v855, %v851
    %v1168 = vpack.c.b16 %v856, %v852
    %v1169 = vpack.c.b16 %v861, %v857
    %v1170 = vpack.c.b16 %v862, %v858
    %v1171 = vpack.c.b16 %v863, %v859
    %v1172 = vpack.c.b16 %v864, %v860
    %v1173 = vpack.c.b16 %v869, %v865
    %v1174 = vpack.c.b16 %v870, %v866
    %v1175 = vpack.c.b16 %v871, %v867
    %v1176 = vpack.c.b16 %v872, %v868
    %v1177 = vpack.c.b16 %v877, %v873
    %v1178 = vpack.c.b16 %v878, %v874
    %v1179 = vpack.c.b16 %v879, %v875
    %v1180 = vpack.c.b16 %v880, %v876
    %v1181 = vpack.c.b16 %v885, %v881
    %v1182 = vpack.c.b16 %v886, %v882
    %v1183 = vpack.c.b16 %v887, %v883
    %v1184 = vpack.c.b16 %v888, %v884
    %v1185 = vpack.c.b16 %v893, %v889
    %v1186 = vpack.c.b16 %v894, %v890
    %v1187 = vpack.c.b16 %v895, %v891
    %v1188 = vpack.c.b16 %v896, %v892
    %v1189 = vpack.c.b16 %v901, %v897
    %v1190 = vpack.c.b16 %v902, %v898
    %v1191 = vpack.c.b16 %v903, %v899
    %v1192 = vpack.c.b16 %v904, %v900
    %v1193 = vpack.c.b16 %v909, %v905
    %v1194 = vpack.c.b16 %v910, %v906
    %v1195 = vpack.c.b16 %v911, %v907
    %v1196 = vpack.c.b16 %v912, %v908
    %v1197 = vpack.c.b16 %v917, %v913
    %v1198 = vpack.c.b16 %v918, %v914
    %v1199 = vpack.c.b16 %v919, %v915
    %v1200 = vpack.c.b16 %v920, %v916
    %v1201 = vpack.c.b16 %v925, %v921
    %v1202 = vpack.c.b16 %v926, %v922
    %v1203 = vpack.c.b16 %v927, %v923
    %v1204 = vpack.c.b16 %v928, %v924
    %v1205 = vpack.c.b16 %v933, %v929
    %v1206 = vpack.c.b16 %v934, %v930
    %v1207 = vpack.c.b16 %v935, %v931
    %v1208 = vpack.c.b16 %v936, %v932
    %v1209 = vpack.c.b16 %v941, %v937
    %v1210 = vpack.c.b16 %v942, %v938
    %v1211 = vpack.c.b16 %v943, %v939
    %v1212 = vpack.c.b16 %v944, %v940
    %v1213 = vpack.c.b16 %v949, %v945
    %v1214 = vpack.c.b16 %v950, %v946
    %v1215 = vpack.c.b16 %v951, %v947
    %v1216 = vpack.c.b16 %v952, %v948
    %v1217 = vpack.c.b16 %v957, %v953
    %v1218 = vpack.c.b16 %v958, %v954
    %v1219 = vpack.c.b16 %v959, %v955
    %v1220 = vpack.c.b16 %v960, %v956
    %v1221 = vpack.c.b16 %v965, %v961
    %v1222 = vpack.c.b16 %v966, %v962
    %v1223 = vpack.c.b16 %v967, %v963
    %v1224 = vpack.c.b16 %v968, %v964
    %v1225 = vpack.c.b16 %v973, %v969
    %v1226 = vpack.c.b16 %v974, %v970
    %v1227 = vpack.c.b16 %v975, %v971
    %v1228 = vpack.c.b16 %v976, %v972
    %v1229 = vpack.c.b16 %v981, %v977
    %v1230 = vpack.c.b16 %v982, %v978
    %v1231 = vpack.c.b16 %v983, %v979
    %v1232 = vpack.c.b16 %v984, %v980
    %v1233 = vpack.c.b16 %v989, %v985
    %v1234 = vpack.c.b16 %v990, %v986
    %v1235 = vpack.c.b16 %v991, %v987
    %v1236 = vpack.c.b16 %v992, %v988
    %v1237 = vpack.c.b16 %v997, %v993
    %v1238 = vpack.c.b16 %v998, %v994
    %v1239 = vpack.c.b16 %v999, %v995
    %v1240 = vpack.c.b16 %v1000, %v996
    %v1241 = vpack.c.b16 %v1005, %v1001
    %v1242 = vpack.c.b16 %v1006, %v1002
    %v1243 = vpack.c.b16 %v1007, %v1003
    %v1244 = vpack.c.b16 %v1008, %v1004
    %v1245 = vpack.c.b16 %v1013, %v1009
    %v1246 = vpack.c.b16 %v1014, %v1010
    %v1247 = vpack.c.b16 %v1015, %v1011
    %v1248 = vpack.c.b16 %v1016, %v1012
    %v1249 = vpack.c.b16 %v1021, %v1017
    %v1250 = vpack.c.b16 %v1022, %v1018
    %v1251 = vpack.c.b16 %v1023, %v1019
    %v1252 = vpack.c.b16 %v1024, %v1020
    %v1253 = vpack.c.b16 %v1029, %v1025
    %v1254 = vpack.c.b16 %v1030, %v1026
    %v1255 = vpack.c.b16 %v1031, %v1027
    %v1256 = vpack.c.b16 %v1032, %v1028
    %1481 = vmatprep.subr.bf16.mxu0 %v1062
    %1482 = vmatpush1.bf16.msra.mxu0 %v1061
    %1483 = vmatprep.subr.bf16.mxu0 %v1058
    %1484 = vmatpush1.bf16.msra.mxu0 %v1057
    %1485 = vmatprep.subr.bf16.mxu0 %v1054
    %1486 = vmatpush1.bf16.msra.mxu0 %v1053
    %1487 = vmatprep.subr.bf16.mxu0 %v1050
    %1488 = vmatpush1.bf16.msra.mxu0 %v1049
    %1489 = vmatprep.subr.bf16.mxu0 %v1046
    %1490 = vmatpush1.bf16.msra.mxu0 %v1045
    %1491 = vmatprep.subr.bf16.mxu0 %v1042
    %1492 = vmatpush1.bf16.msra.mxu0 %v1041
    %1493 = vmatprep.subr.bf16.mxu0 %v1038
    %1494 = vmatpush1.bf16.msra.mxu0 %v1037
    %1495 = vmatprep.subr.bf16.mxu0 %v1034
    %1496 = vmatpush1.bf16.msra.mxu0 %v1033
    %1497 = vmatprep.subr.bf16.mxu0 %v1094
    %1498 = vmatpush2.bf16.msra.mxu0 %v1093
    %1499 = vmatprep.subr.bf16.mxu0 %v1090
    %1500 = vmatpush2.bf16.msra.mxu0 %v1089
    %1501 = vmatprep.subr.bf16.mxu0 %v1086
    %1502 = vmatpush2.bf16.msra.mxu0 %v1085
    %1503 = vmatprep.subr.bf16.mxu0 %v1082
    %1504 = vmatpush2.bf16.msra.mxu0 %v1081
    %1505 = vmatprep.subr.bf16.mxu0 %v1078
    %1506 = vmatpush2.bf16.msra.mxu0 %v1077
    %1507 = vmatprep.subr.bf16.mxu0 %v1074
    %1508 = vmatpush2.bf16.msra.mxu0 %v1073
    %1509 = vmatprep.subr.bf16.mxu0 %v1070
    %1510 = vmatpush2.bf16.msra.mxu0 %v1069
    %1511 = vmatprep.subr.bf16.mxu0 %v1066
    %1512 = vmatpush2.bf16.msra.mxu0 %v1065
    %1513 = vmatprep.mubr.bf16.mxu0 %v348
    %1514 = vmatmul.mubr.bf16.gmra.mxu0 %v347
    %v1515 = vpop.f32.mrf.mxu0
    %v1516 = vadd.f32 %v319, %v1515
    %v1517 = vpop.f32.mrf.mxu0
    %v1518 = vadd.f32 %v323, %v1517
    %v1519 = vpop.f32.mrf.mxu0
    %v1520 = vpop.f32.mrf.mxu0
    %1521 = vdwg.mxu0
    %1522 = vmatprep.subr.bf16.mxu0 %v1126
    %1523 = vmatpush1.bf16.msra.mxu0 %v1125
    %1524 = vmatprep.subr.bf16.mxu0 %v1122
    %1525 = vmatpush1.bf16.msra.mxu0 %v1121
    %1526 = vmatprep.subr.bf16.mxu0 %v1118
    %1527 = vmatpush1.bf16.msra.mxu0 %v1117
    %1528 = vmatprep.subr.bf16.mxu0 %v1114
    %1529 = vmatpush1.bf16.msra.mxu0 %v1113
    %1530 = vmatprep.subr.bf16.mxu0 %v1110
    %1531 = vmatpush1.bf16.msra.mxu0 %v1109
    %1532 = vmatprep.subr.bf16.mxu0 %v1106
    %1533 = vmatpush1.bf16.msra.mxu0 %v1105
    %1534 = vmatprep.subr.bf16.mxu0 %v1102
    %1535 = vmatpush1.bf16.msra.mxu0 %v1101
    %1536 = vmatprep.subr.bf16.mxu0 %v1098
    %1537 = vmatpush1.bf16.msra.mxu0 %v1097
    %1538 = vmatprep.subr.bf16.mxu0 %v1158
    %1539 = vmatpush2.bf16.msra.mxu0 %v1157
    %1540 = vmatprep.subr.bf16.mxu0 %v1154
    %1541 = vmatpush2.bf16.msra.mxu0 %v1153
    %1542 = vmatprep.subr.bf16.mxu0 %v1150
    %1543 = vmatpush2.bf16.msra.mxu0 %v1149
    %1544 = vmatprep.subr.bf16.mxu0 %v1146
    %1545 = vmatpush2.bf16.msra.mxu0 %v1145
    %1546 = vmatprep.subr.bf16.mxu0 %v1142
    %1547 = vmatpush2.bf16.msra.mxu0 %v1141
    %1548 = vmatprep.subr.bf16.mxu0 %v1138
    %1549 = vmatpush2.bf16.msra.mxu0 %v1137
    %1550 = vmatprep.subr.bf16.mxu0 %v1134
    %1551 = vmatpush2.bf16.msra.mxu0 %v1133
    %1552 = vmatprep.subr.bf16.mxu0 %v1130
    %1553 = vmatpush2.bf16.msra.mxu0 %v1129
    %1554 = vmatprep.mubr.bf16.mxu0 %v350
    %1555 = vmatmul.mubr.bf16.gmra.mxu0 %v349
    %v1556 = vpop.f32.mrf.mxu0
    %v1557 = vadd.f32 %v1516, %v1556
    %v1558 = vpop.f32.mrf.mxu0
    %v1559 = vadd.f32 %v1518, %v1558
    %v1560 = vpop.f32.mrf.mxu0
    %v1561 = vpop.f32.mrf.mxu0
    %1562 = vdwg.mxu0
    %1563 = vmatprep.subr.bf16.mxu0 %v1190
    %1564 = vmatpush1.bf16.msra.mxu0 %v1189
    %1565 = vmatprep.subr.bf16.mxu0 %v1186
    %1566 = vmatpush1.bf16.msra.mxu0 %v1185
    %1567 = vmatprep.subr.bf16.mxu0 %v1182
    %1568 = vmatpush1.bf16.msra.mxu0 %v1181
    %1569 = vmatprep.subr.bf16.mxu0 %v1178
    %1570 = vmatpush1.bf16.msra.mxu0 %v1177
    %1571 = vmatprep.subr.bf16.mxu0 %v1174
    %1572 = vmatpush1.bf16.msra.mxu0 %v1173
    %1573 = vmatprep.subr.bf16.mxu0 %v1170
    %1574 = vmatpush1.bf16.msra.mxu0 %v1169
    %1575 = vmatprep.subr.bf16.mxu0 %v1166
    %1576 = vmatpush1.bf16.msra.mxu0 %v1165
    %1577 = vmatprep.subr.bf16.mxu0 %v1162
    %1578 = vmatpush1.bf16.msra.mxu0 %v1161
    %1579 = vmatprep.subr.bf16.mxu0 %v1222
    %1580 = vmatpush2.bf16.msra.mxu0 %v1221
    %1581 = vmatprep.subr.bf16.mxu0 %v1218
    %1582 = vmatpush2.bf16.msra.mxu0 %v1217
    %1583 = vmatprep.subr.bf16.mxu0 %v1214
    %1584 = vmatpush2.bf16.msra.mxu0 %v1213
    %1585 = vmatprep.subr.bf16.mxu0 %v1210
    %1586 = vmatpush2.bf16.msra.mxu0 %v1209
    %1587 = vmatprep.subr.bf16.mxu0 %v1206
    %1588 = vmatpush2.bf16.msra.mxu0 %v1205
    %1589 = vmatprep.subr.bf16.mxu0 %v1202
    %1590 = vmatpush2.bf16.msra.mxu0 %v1201
    %1591 = vmatprep.subr.bf16.mxu0 %v1198
    %1592 = vmatpush2.bf16.msra.mxu0 %v1197
    %1593 = vmatprep.subr.bf16.mxu0 %v1194
    %1594 = vmatpush2.bf16.msra.mxu0 %v1193
    %1595 = vmatprep.mubr.bf16.mxu0 %v352
    %1596 = vmatmul.mubr.bf16.gmra.mxu0 %v351
    %v1597 = vpop.f32.mrf.mxu0
    %v1598 = vadd.f32 %v1557, %v1597
    %v1599 = vpop.f32.mrf.mxu0
    %v1600 = vadd.f32 %v1559, %v1599
    %v1601 = vpop.f32.mrf.mxu0
    %v1602 = vpop.f32.mrf.mxu0
    %1603 = vdwg.mxu0
    %1604 = vmatprep.subr.bf16.mxu0 %v1254
    %1605 = vmatpush1.bf16.msra.mxu0 %v1253
    %1606 = vmatprep.subr.bf16.mxu0 %v1250
    %1607 = vmatpush1.bf16.msra.mxu0 %v1249
    %1608 = vmatprep.subr.bf16.mxu0 %v1246
    %1609 = vmatpush1.bf16.msra.mxu0 %v1245
    %1610 = vmatprep.subr.bf16.mxu0 %v1242
    %1611 = vmatpush1.bf16.msra.mxu0 %v1241
    %1612 = vmatprep.subr.bf16.mxu0 %v1238
    %1613 = vmatpush1.bf16.msra.mxu0 %v1237
    %1614 = vmatprep.subr.bf16.mxu0 %v1234
    %1615 = vmatpush1.bf16.msra.mxu0 %v1233
    %1616 = vmatprep.subr.bf16.mxu0 %v1230
    %1617 = vmatpush1.bf16.msra.mxu0 %v1229
    %1618 = vmatprep.subr.bf16.mxu0 %v1226
    %1619 = vmatpush1.bf16.msra.mxu0 %v1225
    %1620 = vmatprep.subr.bf16.mxu0 0
    %1621 = vmatpush2.bf16.msra.mxu0 0
    %1622 = vmatprep.subr.bf16.mxu0 0
    %1623 = vmatpush2.bf16.msra.mxu0 0
    %1624 = vmatprep.subr.bf16.mxu0 0
    %1625 = vmatpush2.bf16.msra.mxu0 0
    %1626 = vmatprep.subr.bf16.mxu0 0
    %1627 = vmatpush2.bf16.msra.mxu0 0
    %1628 = vmatprep.subr.bf16.mxu0 0
    %1629 = vmatpush2.bf16.msra.mxu0 0
    %1630 = vmatprep.subr.bf16.mxu0 0
    %1631 = vmatpush2.bf16.msra.mxu0 0
    %1632 = vmatprep.subr.bf16.mxu0 0
    %1633 = vmatpush2.bf16.msra.mxu0 0
    %1634 = vmatprep.subr.bf16.mxu0 0
    %1635 = vmatpush2.bf16.msra.mxu0 0
    %1636 = vmatprep.mubr.bf16.mxu0 0
    %1637 = vmatmul.mubr.bf16.gmra.mxu0 %v353
    %v1638 = vpop.f32.mrf.mxu0
    %v1639 = vadd.f32 %v1598, %v1638
    %v1640 = vpop.f32.mrf.mxu0
    %v1641 = vadd.f32 %v1600, %v1640
    %v1642 = vpop.f32.mrf.mxu0
    %v1643 = vpop.f32.mrf.mxu0
    %1644 = vdwg.mxu0
    %1645 = vmatprep.subr.bf16.mxu0 %v1064
    %1646 = vmatpush1.bf16.msra.mxu0 %v1063
    %1647 = vmatprep.subr.bf16.mxu0 %v1060
    %1648 = vmatpush1.bf16.msra.mxu0 %v1059
    %1649 = vmatprep.subr.bf16.mxu0 %v1056
    %1650 = vmatpush1.bf16.msra.mxu0 %v1055
    %1651 = vmatprep.subr.bf16.mxu0 %v1052
    %1652 = vmatpush1.bf16.msra.mxu0 %v1051
    %1653 = vmatprep.subr.bf16.mxu0 %v1048
    %1654 = vmatpush1.bf16.msra.mxu0 %v1047
    %1655 = vmatprep.subr.bf16.mxu0 %v1044
    %1656 = vmatpush1.bf16.msra.mxu0 %v1043
    %1657 = vmatprep.subr.bf16.mxu0 %v1040
    %1658 = vmatpush1.bf16.msra.mxu0 %v1039
    %1659 = vmatprep.subr.bf16.mxu0 %v1036
    %1660 = vmatpush1.bf16.msra.mxu0 %v1035
    %1661 = vmatprep.subr.bf16.mxu0 %v1096
    %1662 = vmatpush2.bf16.msra.mxu0 %v1095
    %1663 = vmatprep.subr.bf16.mxu0 %v1092
    %1664 = vmatpush2.bf16.msra.mxu0 %v1091
    %1665 = vmatprep.subr.bf16.mxu0 %v1088
    %1666 = vmatpush2.bf16.msra.mxu0 %v1087
    %1667 = vmatprep.subr.bf16.mxu0 %v1084
    %1668 = vmatpush2.bf16.msra.mxu0 %v1083
    %1669 = vmatprep.subr.bf16.mxu0 %v1080
    %1670 = vmatpush2.bf16.msra.mxu0 %v1079
    %1671 = vmatprep.subr.bf16.mxu0 %v1076
    %1672 = vmatpush2.bf16.msra.mxu0 %v1075
    %1673 = vmatprep.subr.bf16.mxu0 %v1072
    %1674 = vmatpush2.bf16.msra.mxu0 %v1071
    %1675 = vmatprep.subr.bf16.mxu0 %v1068
    %1676 = vmatpush2.bf16.msra.mxu0 %v1067
    %1677 = vmatprep.mubr.bf16.mxu0 %v348
    %1678 = vmatmul.mubr.bf16.gmra.mxu0 %v347
    %v1679 = vpop.f32.mrf.mxu0
    %v1680 = vadd.f32 %v327, %v1679
    %v1681 = vpop.f32.mrf.mxu0
    %v1682 = vadd.f32 %v331, %v1681
    %v1683 = vpop.f32.mrf.mxu0
    %v1684 = vpop.f32.mrf.mxu0
    %1685 = vdwg.mxu0
    %1686 = vmatprep.subr.bf16.mxu0 %v1128
    %1687 = vmatpush1.bf16.msra.mxu0 %v1127
    %1688 = vmatprep.subr.bf16.mxu0 %v1124
    %1689 = vmatpush1.bf16.msra.mxu0 %v1123
    %1690 = vmatprep.subr.bf16.mxu0 %v1120
    %1691 = vmatpush1.bf16.msra.mxu0 %v1119
    %1692 = vmatprep.subr.bf16.mxu0 %v1116
    %1693 = vmatpush1.bf16.msra.mxu0 %v1115
    %1694 = vmatprep.subr.bf16.mxu0 %v1112
    %1695 = vmatpush1.bf16.msra.mxu0 %v1111
    %1696 = vmatprep.subr.bf16.mxu0 %v1108
    %1697 = vmatpush1.bf16.msra.mxu0 %v1107
    %1698 = vmatprep.subr.bf16.mxu0 %v1104
    %1699 = vmatpush1.bf16.msra.mxu0 %v1103
    %1700 = vmatprep.subr.bf16.mxu0 %v1100
    %1701 = vmatpush1.bf16.msra.mxu0 %v1099
    %1702 = vmatprep.subr.bf16.mxu0 %v1160
    %1703 = vmatpush2.bf16.msra.mxu0 %v1159
    %1704 = vmatprep.subr.bf16.mxu0 %v1156
    %1705 = vmatpush2.bf16.msra.mxu0 %v1155
    %1706 = vmatprep.subr.bf16.mxu0 %v1152
    %1707 = vmatpush2.bf16.msra.mxu0 %v1151
    %1708 = vmatprep.subr.bf16.mxu0 %v1148
    %1709 = vmatpush2.bf16.msra.mxu0 %v1147
    %1710 = vmatprep.subr.bf16.mxu0 %v1144
    %1711 = vmatpush2.bf16.msra.mxu0 %v1143
    %1712 = vmatprep.subr.bf16.mxu0 %v1140
    %1713 = vmatpush2.bf16.msra.mxu0 %v1139
    %1714 = vmatprep.subr.bf16.mxu0 %v1136
    %1715 = vmatpush2.bf16.msra.mxu0 %v1135
    %1716 = vmatprep.subr.bf16.mxu0 %v1132
    %1717 = vmatpush2.bf16.msra.mxu0 %v1131
    %1718 = vmatprep.mubr.bf16.mxu0 %v350
    %1719 = vmatmul.mubr.bf16.gmra.mxu0 %v349
    %v1720 = vpop.f32.mrf.mxu0
    %v1721 = vadd.f32 %v1680, %v1720
    %v1722 = vpop.f32.mrf.mxu0
    %v1723 = vadd.f32 %v1682, %v1722
    %v1724 = vpop.f32.mrf.mxu0
    %v1725 = vpop.f32.mrf.mxu0
    %1726 = vdwg.mxu0
    %1727 = vmatprep.subr.bf16.mxu0 %v1192
    %1728 = vmatpush1.bf16.msra.mxu0 %v1191
    %1729 = vmatprep.subr.bf16.mxu0 %v1188
    %1730 = vmatpush1.bf16.msra.mxu0 %v1187
    %1731 = vmatprep.subr.bf16.mxu0 %v1184
    %1732 = vmatpush1.bf16.msra.mxu0 %v1183
    %1733 = vmatprep.subr.bf16.mxu0 %v1180
    %1734 = vmatpush1.bf16.msra.mxu0 %v1179
    %1735 = vmatprep.subr.bf16.mxu0 %v1176
    %1736 = vmatpush1.bf16.msra.mxu0 %v1175
    %1737 = vmatprep.subr.bf16.mxu0 %v1172
    %1738 = vmatpush1.bf16.msra.mxu0 %v1171
    %1739 = vmatprep.subr.bf16.mxu0 %v1168
    %1740 = vmatpush1.bf16.msra.mxu0 %v1167
    %1741 = vmatprep.subr.bf16.mxu0 %v1164
    %1742 = vmatpush1.bf16.msra.mxu0 %v1163
    %1743 = vmatprep.subr.bf16.mxu0 %v1224
    %1744 = vmatpush2.bf16.msra.mxu0 %v1223
    %1745 = vmatprep.subr.bf16.mxu0 %v1220
    %1746 = vmatpush2.bf16.msra.mxu0 %v1219
    %1747 = vmatprep.subr.bf16.mxu0 %v1216
    %1748 = vmatpush2.bf16.msra.mxu0 %v1215
    %1749 = vmatprep.subr.bf16.mxu0 %v1212
    %1750 = vmatpush2.bf16.msra.mxu0 %v1211
    %1751 = vmatprep.subr.bf16.mxu0 %v1208
    %1752 = vmatpush2.bf16.msra.mxu0 %v1207
    %1753 = vmatprep.subr.bf16.mxu0 %v1204
    %1754 = vmatpush2.bf16.msra.mxu0 %v1203
    %1755 = vmatprep.subr.bf16.mxu0 %v1200
    %1756 = vmatpush2.bf16.msra.mxu0 %v1199
    %1757 = vmatprep.subr.bf16.mxu0 %v1196
    %1758 = vmatpush2.bf16.msra.mxu0 %v1195
    %1759 = vmatprep.mubr.bf16.mxu0 %v352
    %1760 = vmatmul.mubr.bf16.gmra.mxu0 %v351
    %v1761 = vpop.f32.mrf.mxu0
    %v1762 = vadd.f32 %v1721, %v1761
    %v1763 = vpop.f32.mrf.mxu0
    %v1764 = vadd.f32 %v1723, %v1763
    %v1765 = vpop.f32.mrf.mxu0
    %v1766 = vpop.f32.mrf.mxu0
    %1767 = vdwg.mxu0
    %1768 = vmatprep.subr.bf16.mxu0 %v1256
    %1769 = vmatpush1.bf16.msra.mxu0 %v1255
    %1770 = vmatprep.subr.bf16.mxu0 %v1252
    %1771 = vmatpush1.bf16.msra.mxu0 %v1251
    %1772 = vmatprep.subr.bf16.mxu0 %v1248
    %1773 = vmatpush1.bf16.msra.mxu0 %v1247
    %1774 = vmatprep.subr.bf16.mxu0 %v1244
    %1775 = vmatpush1.bf16.msra.mxu0 %v1243
    %1776 = vmatprep.subr.bf16.mxu0 %v1240
    %1777 = vmatpush1.bf16.msra.mxu0 %v1239
    %1778 = vmatprep.subr.bf16.mxu0 %v1236
    %1779 = vmatpush1.bf16.msra.mxu0 %v1235
    %1780 = vmatprep.subr.bf16.mxu0 %v1232
    %1781 = vmatpush1.bf16.msra.mxu0 %v1231
    %1782 = vmatprep.subr.bf16.mxu0 %v1228
    %1783 = vmatpush1.bf16.msra.mxu0 %v1227
    %1784 = vmatprep.subr.bf16.mxu0 0
    %1785 = vmatpush2.bf16.msra.mxu0 0
    %1786 = vmatprep.subr.bf16.mxu0 0
    %1787 = vmatpush2.bf16.msra.mxu0 0
    %1788 = vmatprep.subr.bf16.mxu0 0
    %1789 = vmatpush2.bf16.msra.mxu0 0
    %1790 = vmatprep.subr.bf16.mxu0 0
    %1791 = vmatpush2.bf16.msra.mxu0 0
    %1792 = vmatprep.subr.bf16.mxu0 0
    %1793 = vmatpush2.bf16.msra.mxu0 0
    %1794 = vmatprep.subr.bf16.mxu0 0
    %1795 = vmatpush2.bf16.msra.mxu0 0
    %1796 = vmatprep.subr.bf16.mxu0 0
    %1797 = vmatpush2.bf16.msra.mxu0 0
    %1798 = vmatprep.subr.bf16.mxu0 0
    %1799 = vmatpush2.bf16.msra.mxu0 0
    %1800 = vmatprep.mubr.bf16.mxu0 0
    %1801 = vmatmul.mubr.bf16.gmra.mxu0 %v353
    %v1802 = vpop.f32.mrf.mxu0
    %v1803 = vadd.f32 %v1762, %v1802
    %v1804 = vpop.f32.mrf.mxu0
    %v1805 = vadd.f32 %v1764, %v1804
    %v1806 = vpop.f32.mrf.mxu0
    %v1807 = vpop.f32.mrf.mxu0
    %1808 = vdwg.mxu0
    %v1809 = vmax.f32 %v1639, 0.0
    %v1810 = vmax.f32 %v1641, 0.0
    %v1811 = vmax.f32 %v1803, 0.0
    %v1812 = vmax.f32 %v1805, 0.0
    %v1813 = vpack.c.bf16 %v1809, %v1809
    %v1814 = vpack.c.bf16 %v1810, %v1810
    %v1815 = vpack.c.bf16 %v1811, %v1811
    %v1816 = vpack.c.bf16 %v1812, %v1812
    %v1817 = vld [vmem:[#allocation4] sm:$0xff]
    %v1818 = vld [vmem:[#allocation4 + $0x8] sm:$0xff]
    %v1819 = vld [vmem:[#allocation4 + $0x10] sm:$0xff]
    %v1820 = vld [vmem:[#allocation4 + $0x18] sm:$0xff]
    %v1821 = vld [vmem:[#allocation4 + $0x20] sm:$0xff]
    %v1822 = vld [vmem:[#allocation4 + $0x28] sm:$0xff]
    %v1823 = vld [vmem:[#allocation4 + $0x30] sm:$0xff]
    %v1824 = vld [vmem:[#allocation4 + $0x38] sm:$0xff]
    %v1825 = vld [vmem:[#allocation4 + $0x40] sm:$0xff]
    %v1826 = vld [vmem:[#allocation4 + $0x48] sm:$0xff]
    %v1827 = vld [vmem:[#allocation4 + $0x50] sm:$0xff]
    %v1828 = vld [vmem:[#allocation4 + $0x58] sm:$0xff]
    %v1829 = vld [vmem:[#allocation4 + $0x60] sm:$0xff]
    %v1830 = vld [vmem:[#allocation4 + $0x68] sm:$0xff]
    %v1831 = vld [vmem:[#allocation4 + $0x70] sm:$0xff]
    %v1832 = vld [vmem:[#allocation4 + $0x78] sm:$0xff]
    %v1833 = vld [vmem:[#allocation4 + $0x80] sm:$0xff]
    %v1834 = vld [vmem:[#allocation4 + $0x88] sm:$0xff]
    %v1835 = vld [vmem:[#allocation4 + $0x90] sm:$0xff]
    %v1836 = vld [vmem:[#allocation4 + $0x98] sm:$0xff]
    %v1837 = vld [vmem:[#allocation4 + $0xa0] sm:$0xff]
    %v1838 = vld [vmem:[#allocation4 + $0xa8] sm:$0xff]
    %v1839 = vld [vmem:[#allocation4 + $0xb0] sm:$0xff]
    %v1840 = vld [vmem:[#allocation4 + $0xb8] sm:$0xff]
    %v1841 = vld [vmem:[#allocation4 + $0xc0] sm:$0xff]
    %v1842 = vld [vmem:[#allocation4 + $0xc8] sm:$0xff]
    %v1843 = vld [vmem:[#allocation4 + $0xd0] sm:$0xff]
    %v1844 = vld [vmem:[#allocation4 + $0xd8] sm:$0xff]
    %v1845 = vld [vmem:[#allocation4 + $0xe0] sm:$0xff]
    %v1846 = vld [vmem:[#allocation4 + $0xe8] sm:$0xff]
    %v1847 = vld [vmem:[#allocation4 + $0xf0] sm:$0xff]
    %v1848 = vld [vmem:[#allocation4 + $0xf8] sm:$0xff]
    %v1849 = vld [vmem:[#allocation4 + $0x100] sm:$0xff]
    %v1850 = vld [vmem:[#allocation4 + $0x108] sm:$0xff]
    %v1851 = vld [vmem:[#allocation4 + $0x110] sm:$0xff]
    %v1852 = vld [vmem:[#allocation4 + $0x118] sm:$0xff]
    %v1853 = vld [vmem:[#allocation4 + $0x120] sm:$0xff]
    %v1854 = vld [vmem:[#allocation4 + $0x128] sm:$0xff]
    %v1855 = vld [vmem:[#allocation4 + $0x130] sm:$0xff]
    %v1856 = vld [vmem:[#allocation4 + $0x138] sm:$0xff]
    %v1857 = vld [vmem:[#allocation4 + $0x140] sm:$0xff]
    %v1858 = vld [vmem:[#allocation4 + $0x148] sm:$0xff]
    %v1859 = vld [vmem:[#allocation4 + $0x150] sm:$0xff]
    %v1860 = vld [vmem:[#allocation4 + $0x158] sm:$0xff]
    %v1861 = vld [vmem:[#allocation4 + $0x160] sm:$0xff]
    %v1862 = vld [vmem:[#allocation4 + $0x168] sm:$0xff]
    %v1863 = vld [vmem:[#allocation4 + $0x170] sm:$0xff]
    %v1864 = vld [vmem:[#allocation4 + $0x178] sm:$0xff]
    %v1865 = vld [vmem:[#allocation4 + $0x180] sm:$0xff]
    %v1866 = vld [vmem:[#allocation4 + $0x188] sm:$0xff]
    %v1867 = vld [vmem:[#allocation4 + $0x190] sm:$0xff]
    %v1868 = vld [vmem:[#allocation4 + $0x198] sm:$0xff]
    %v1869 = vld [vmem:[#allocation4 + $0x1a0] sm:$0xff]
    %v1870 = vld [vmem:[#allocation4 + $0x1a8] sm:$0xff]
    %v1871 = vld [vmem:[#allocation4 + $0x1b0] sm:$0xff]
    %v1872 = vld [vmem:[#allocation4 + $0x1b8] sm:$0xff]
    %v1873 = vld [vmem:[#allocation4 + $0x1c0] sm:$0xff]
    %v1874 = vld [vmem:[#allocation4 + $0x1c8] sm:$0xff]
    %v1875 = vld [vmem:[#allocation4 + $0x1d0] sm:$0xff]
    %v1876 = vld [vmem:[#allocation4 + $0x1d8] sm:$0xff]
    %v1877 = vld [vmem:[#allocation4 + $0x1e0] sm:$0xff]
    %v1878 = vld [vmem:[#allocation4 + $0x1e8] sm:$0xff]
    %v1879 = vld [vmem:[#allocation4 + $0x1f0] sm:$0xff]
    %v1880 = vld [vmem:[#allocation4 + $0x1f8] sm:$0xff]
    %v1881 = vld [vmem:[%s4] sm:$0x3]
    %v1883 = vlaneseq
    %v1884 = vshrl.u32 %v1883, 7
    %v1885 = vsub.s32 0, %v1884
    %v1886 = vrot.slane %v1881, %v1885
    %v1887 = vlaneseq
    %v1888 = vshrl.u32 %v1887, 7
    %v1889 = vsub.s32 1, %v1888
    %v1890 = vrot.slane %v1881, %v1889
    %v1957 = vunpack.c.l.b16 %v1817
    %v1958 = vunpack.c.h.b16 %v1817
    %v1959 = vunpack.c.l.b16 %v1818
    %v1960 = vunpack.c.h.b16 %v1818
    %v1961 = vunpack.c.l.b16 %v1819
    %v1962 = vunpack.c.h.b16 %v1819
    %v1963 = vunpack.c.l.b16 %v1820
    %v1964 = vunpack.c.h.b16 %v1820
    %v1965 = vunpack.c.l.b16 %v1821
    %v1966 = vunpack.c.h.b16 %v1821
    %v1967 = vunpack.c.l.b16 %v1822
    %v1968 = vunpack.c.h.b16 %v1822
    %v1969 = vunpack.c.l.b16 %v1823
    %v1970 = vunpack.c.h.b16 %v1823
    %v1971 = vunpack.c.l.b16 %v1824
    %v1972 = vunpack.c.h.b16 %v1824
    %v1973 = vunpack.c.l.b16 %v1825
    %v1974 = vunpack.c.h.b16 %v1825
    %v1975 = vunpack.c.l.b16 %v1826
    %v1976 = vunpack.c.h.b16 %v1826
    %v1977 = vunpack.c.l.b16 %v1827
    %v1978 = vunpack.c.h.b16 %v1827
    %v1979 = vunpack.c.l.b16 %v1828
    %v1980 = vunpack.c.h.b16 %v1828
    %v1981 = vunpack.c.l.b16 %v1829
    %v1982 = vunpack.c.h.b16 %v1829
    %v1983 = vunpack.c.l.b16 %v1830
    %v1984 = vunpack.c.h.b16 %v1830
    %v1985 = vunpack.c.l.b16 %v1831
    %v1986 = vunpack.c.h.b16 %v1831
    %v1987 = vunpack.c.l.b16 %v1832
    %v1988 = vunpack.c.h.b16 %v1832
    %v1989 = vunpack.c.l.b16 %v1833
    %v1990 = vunpack.c.h.b16 %v1833
    %v1991 = vunpack.c.l.b16 %v1834
    %v1992 = vunpack.c.h.b16 %v1834
    %v1993 = vunpack.c.l.b16 %v1835
    %v1994 = vunpack.c.h.b16 %v1835
    %v1995 = vunpack.c.l.b16 %v1836
    %v1996 = vunpack.c.h.b16 %v1836
    %v1997 = vunpack.c.l.b16 %v1837
    %v1998 = vunpack.c.h.b16 %v1837
    %v1999 = vunpack.c.l.b16 %v1838
    %v2000 = vunpack.c.h.b16 %v1838
    %v2001 = vunpack.c.l.b16 %v1839
    %v2002 = vunpack.c.h.b16 %v1839
    %v2003 = vunpack.c.l.b16 %v1840
    %v2004 = vunpack.c.h.b16 %v1840
    %v2005 = vunpack.c.l.b16 %v1841
    %v2006 = vunpack.c.h.b16 %v1841
    %v2007 = vunpack.c.l.b16 %v1842
    %v2008 = vunpack.c.h.b16 %v1842
    %v2009 = vunpack.c.l.b16 %v1843
    %v2010 = vunpack.c.h.b16 %v1843
    %v2011 = vunpack.c.l.b16 %v1844
    %v2012 = vunpack.c.h.b16 %v1844
    %v2013 = vunpack.c.l.b16 %v1845
    %v2014 = vunpack.c.h.b16 %v1845
    %v2015 = vunpack.c.l.b16 %v1846
    %v2016 = vunpack.c.h.b16 %v1846
    %v2017 = vunpack.c.l.b16 %v1847
    %v2018 = vunpack.c.h.b16 %v1847
    %v2019 = vunpack.c.l.b16 %v1848
    %v2020 = vunpack.c.h.b16 %v1848
    %v2021 = vunpack.c.l.b16 %v1849
    %v2022 = vunpack.c.h.b16 %v1849
    %v2023 = vunpack.c.l.b16 %v1850
    %v2024 = vunpack.c.h.b16 %v1850
    %v2025 = vunpack.c.l.b16 %v1851
    %v2026 = vunpack.c.h.b16 %v1851
    %v2027 = vunpack.c.l.b16 %v1852
    %v2028 = vunpack.c.h.b16 %v1852
    %v2029 = vunpack.c.l.b16 %v1853
    %v2030 = vunpack.c.h.b16 %v1853
    %v2031 = vunpack.c.l.b16 %v1854
    %v2032 = vunpack.c.h.b16 %v1854
    %v2033 = vunpack.c.l.b16 %v1855
    %v2034 = vunpack.c.h.b16 %v1855
    %v2035 = vunpack.c.l.b16 %v1856
    %v2036 = vunpack.c.h.b16 %v1856
    %v2037 = vunpack.c.l.b16 %v1857
    %v2038 = vunpack.c.h.b16 %v1857
    %v2039 = vunpack.c.l.b16 %v1858
    %v2040 = vunpack.c.h.b16 %v1858
    %v2041 = vunpack.c.l.b16 %v1859
    %v2042 = vunpack.c.h.b16 %v1859
    %v2043 = vunpack.c.l.b16 %v1860
    %v2044 = vunpack.c.h.b16 %v1860
    %v2045 = vunpack.c.l.b16 %v1861
    %v2046 = vunpack.c.h.b16 %v1861
    %v2047 = vunpack.c.l.b16 %v1862
    %v2048 = vunpack.c.h.b16 %v1862
    %v2049 = vunpack.c.l.b16 %v1863
    %v2050 = vunpack.c.h.b16 %v1863
    %v2051 = vunpack.c.l.b16 %v1864
    %v2052 = vunpack.c.h.b16 %v1864
    %v2053 = vunpack.c.l.b16 %v1865
    %v2054 = vunpack.c.h.b16 %v1865
    %v2055 = vunpack.c.l.b16 %v1866
    %v2056 = vunpack.c.h.b16 %v1866
    %v2057 = vunpack.c.l.b16 %v1867
    %v2058 = vunpack.c.h.b16 %v1867
    %v2059 = vunpack.c.l.b16 %v1868
    %v2060 = vunpack.c.h.b16 %v1868
    %v2061 = vunpack.c.l.b16 %v1869
    %v2062 = vunpack.c.h.b16 %v1869
    %v2063 = vunpack.c.l.b16 %v1870
    %v2064 = vunpack.c.h.b16 %v1870
    %v2065 = vunpack.c.l.b16 %v1871
    %v2066 = vunpack.c.h.b16 %v1871
    %v2067 = vunpack.c.l.b16 %v1872
    %v2068 = vunpack.c.h.b16 %v1872
    %v2069 = vunpack.c.l.b16 %v1873
    %v2070 = vunpack.c.h.b16 %v1873
    %v2071 = vunpack.c.l.b16 %v1874
    %v2072 = vunpack.c.h.b16 %v1874
    %v2073 = vunpack.c.l.b16 %v1875
    %v2074 = vunpack.c.h.b16 %v1875
    %v2075 = vunpack.c.l.b16 %v1876
    %v2076 = vunpack.c.h.b16 %v1876
    %v2077 = vunpack.c.l.b16 %v1877
    %v2078 = vunpack.c.h.b16 %v1877
    %v2079 = vunpack.c.l.b16 %v1878
    %v2080 = vunpack.c.h.b16 %v1878
    %v2081 = vunpack.c.l.b16 %v1879
    %v2082 = vunpack.c.h.b16 %v1879
    %v2083 = vunpack.c.l.b16 %v1880
    %v2084 = vunpack.c.h.b16 %v1880
    %v2085 = vpack.c.b16 %v1959, %v1957
    %v2086 = vpack.c.b16 %v1960, %v1958
    %v2087 = vpack.c.b16 %v1963, %v1961
    %v2088 = vpack.c.b16 %v1964, %v1962
    %v2089 = vpack.c.b16 %v1967, %v1965
    %v2090 = vpack.c.b16 %v1968, %v1966
    %v2091 = vpack.c.b16 %v1971, %v1969
    %v2092 = vpack.c.b16 %v1972, %v1970
    %v2093 = vpack.c.b16 %v1975, %v1973
    %v2094 = vpack.c.b16 %v1976, %v1974
    %v2095 = vpack.c.b16 %v1979, %v1977
    %v2096 = vpack.c.b16 %v1980, %v1978
    %v2097 = vpack.c.b16 %v1983, %v1981
    %v2098 = vpack.c.b16 %v1984, %v1982
    %v2099 = vpack.c.b16 %v1987, %v1985
    %v2100 = vpack.c.b16 %v1988, %v1986
    %v2101 = vpack.c.b16 %v1991, %v1989
    %v2102 = vpack.c.b16 %v1992, %v1990
    %v2103 = vpack.c.b16 %v1995, %v1993
    %v2104 = vpack.c.b16 %v1996, %v1994
    %v2105 = vpack.c.b16 %v1999, %v1997
    %v2106 = vpack.c.b16 %v2000, %v1998
    %v2107 = vpack.c.b16 %v2003, %v2001
    %v2108 = vpack.c.b16 %v2004, %v2002
    %v2109 = vpack.c.b16 %v2007, %v2005
    %v2110 = vpack.c.b16 %v2008, %v2006
    %v2111 = vpack.c.b16 %v2011, %v2009
    %v2112 = vpack.c.b16 %v2012, %v2010
    %v2113 = vpack.c.b16 %v2015, %v2013
    %v2114 = vpack.c.b16 %v2016, %v2014
    %v2115 = vpack.c.b16 %v2019, %v2017
    %v2116 = vpack.c.b16 %v2020, %v2018
    %v2117 = vpack.c.b16 %v2023, %v2021
    %v2118 = vpack.c.b16 %v2024, %v2022
    %v2119 = vpack.c.b16 %v2027, %v2025
    %v2120 = vpack.c.b16 %v2028, %v2026
    %v2121 = vpack.c.b16 %v2031, %v2029
    %v2122 = vpack.c.b16 %v2032, %v2030
    %v2123 = vpack.c.b16 %v2035, %v2033
    %v2124 = vpack.c.b16 %v2036, %v2034
    %v2125 = vpack.c.b16 %v2039, %v2037
    %v2126 = vpack.c.b16 %v2040, %v2038
    %v2127 = vpack.c.b16 %v2043, %v2041
    %v2128 = vpack.c.b16 %v2044, %v2042
    %v2129 = vpack.c.b16 %v2047, %v2045
    %v2130 = vpack.c.b16 %v2048, %v2046
    %v2131 = vpack.c.b16 %v2051, %v2049
    %v2132 = vpack.c.b16 %v2052, %v2050
    %v2133 = vpack.c.b16 %v2055, %v2053
    %v2134 = vpack.c.b16 %v2056, %v2054
    %v2135 = vpack.c.b16 %v2059, %v2057
    %v2136 = vpack.c.b16 %v2060, %v2058
    %v2137 = vpack.c.b16 %v2063, %v2061
    %v2138 = vpack.c.b16 %v2064, %v2062
    %v2139 = vpack.c.b16 %v2067, %v2065
    %v2140 = vpack.c.b16 %v2068, %v2066
    %v2141 = vpack.c.b16 %v2071, %v2069
    %v2142 = vpack.c.b16 %v2072, %v2070
    %v2143 = vpack.c.b16 %v2075, %v2073
    %v2144 = vpack.c.b16 %v2076, %v2074
    %v2145 = vpack.c.b16 %v2079, %v2077
    %v2146 = vpack.c.b16 %v2080, %v2078
    %v2147 = vpack.c.b16 %v2083, %v2081
    %v2148 = vpack.c.b16 %v2084, %v2082
    %2213 = vmatprep.subr.bf16.mxu0 %v2100
    %2214 = vmatpush1.bf16.msra.mxu0 %v2099
    %2215 = vmatprep.subr.bf16.mxu0 %v2098
    %2216 = vmatpush1.bf16.msra.mxu0 %v2097
    %2217 = vmatprep.subr.bf16.mxu0 %v2096
    %2218 = vmatpush1.bf16.msra.mxu0 %v2095
    %2219 = vmatprep.subr.bf16.mxu0 %v2094
    %2220 = vmatpush1.bf16.msra.mxu0 %v2093
    %2221 = vmatprep.subr.bf16.mxu0 %v2092
    %2222 = vmatpush1.bf16.msra.mxu0 %v2091
    %2223 = vmatprep.subr.bf16.mxu0 %v2090
    %2224 = vmatpush1.bf16.msra.mxu0 %v2089
    %2225 = vmatprep.subr.bf16.mxu0 %v2088
    %2226 = vmatpush1.bf16.msra.mxu0 %v2087
    %2227 = vmatprep.subr.bf16.mxu0 %v2086
    %2228 = vmatpush1.bf16.msra.mxu0 %v2085
    %2229 = vmatprep.subr.bf16.mxu0 %v2116
    %2230 = vmatpush2.bf16.msra.mxu0 %v2115
    %2231 = vmatprep.subr.bf16.mxu0 %v2114
    %2232 = vmatpush2.bf16.msra.mxu0 %v2113
    %2233 = vmatprep.subr.bf16.mxu0 %v2112
    %2234 = vmatpush2.bf16.msra.mxu0 %v2111
    %2235 = vmatprep.subr.bf16.mxu0 %v2110
    %2236 = vmatpush2.bf16.msra.mxu0 %v2109
    %2237 = vmatprep.subr.bf16.mxu0 %v2108
    %2238 = vmatpush2.bf16.msra.mxu0 %v2107
    %2239 = vmatprep.subr.bf16.mxu0 %v2106
    %2240 = vmatpush2.bf16.msra.mxu0 %v2105
    %2241 = vmatprep.subr.bf16.mxu0 %v2104
    %2242 = vmatpush2.bf16.msra.mxu0 %v2103
    %2243 = vmatprep.subr.bf16.mxu0 %v2102
    %2244 = vmatpush2.bf16.msra.mxu0 %v2101
    %2245 = vmatprep.mubr.bf16.mxu0 %v1814
    %2246 = vmatmul.mubr.bf16.gmra.mxu0 %v1813
    %v2247 = vpop.f32.mrf.mxu0
    %v2248 = vadd.f32 %v1886, %v2247
    %v2249 = vpop.f32.mrf.mxu0
    %v2250 = vadd.f32 %v1890, %v2249
    %v2251 = vpop.f32.mrf.mxu0
    %v2252 = vpop.f32.mrf.mxu0
    %2253 = vdwg.mxu0
    %2254 = vmatprep.subr.bf16.mxu0 %v2132
    %2255 = vmatpush1.bf16.msra.mxu0 %v2131
    %2256 = vmatprep.subr.bf16.mxu0 %v2130
    %2257 = vmatpush1.bf16.msra.mxu0 %v2129
    %2258 = vmatprep.subr.bf16.mxu0 %v2128
    %2259 = vmatpush1.bf16.msra.mxu0 %v2127
    %2260 = vmatprep.subr.bf16.mxu0 %v2126
    %2261 = vmatpush1.bf16.msra.mxu0 %v2125
    %2262 = vmatprep.subr.bf16.mxu0 %v2124
    %2263 = vmatpush1.bf16.msra.mxu0 %v2123
    %2264 = vmatprep.subr.bf16.mxu0 %v2122
    %2265 = vmatpush1.bf16.msra.mxu0 %v2121
    %2266 = vmatprep.subr.bf16.mxu0 %v2120
    %2267 = vmatpush1.bf16.msra.mxu0 %v2119
    %2268 = vmatprep.subr.bf16.mxu0 %v2118
    %2269 = vmatpush1.bf16.msra.mxu0 %v2117
    %2270 = vmatprep.subr.bf16.mxu0 %v2148
    %2271 = vmatpush2.bf16.msra.mxu0 %v2147
    %2272 = vmatprep.subr.bf16.mxu0 %v2146
    %2273 = vmatpush2.bf16.msra.mxu0 %v2145
    %2274 = vmatprep.subr.bf16.mxu0 %v2144
    %2275 = vmatpush2.bf16.msra.mxu0 %v2143
    %2276 = vmatprep.subr.bf16.mxu0 %v2142
    %2277 = vmatpush2.bf16.msra.mxu0 %v2141
    %2278 = vmatprep.subr.bf16.mxu0 %v2140
    %2279 = vmatpush2.bf16.msra.mxu0 %v2139
    %2280 = vmatprep.subr.bf16.mxu0 %v2138
    %2281 = vmatpush2.bf16.msra.mxu0 %v2137
    %2282 = vmatprep.subr.bf16.mxu0 %v2136
    %2283 = vmatpush2.bf16.msra.mxu0 %v2135
    %2284 = vmatprep.subr.bf16.mxu0 %v2134
    %2285 = vmatpush2.bf16.msra.mxu0 %v2133
    %2286 = vmatprep.mubr.bf16.mxu0 %v1816
    %2287 = vmatmul.mubr.bf16.gmra.mxu0 %v1815
    %v2288 = vpop.f32.mrf.mxu0
    %v2289 = vadd.f32 %v2248, %v2288
    %v2290 = vpop.f32.mrf.mxu0
    %v2291 = vadd.f32 %v2250, %v2290
    %v2292 = vpop.f32.mrf.mxu0
    %v2293 = vpop.f32.mrf.mxu0
    %2294 = vdwg.mxu0
    %v2295 = vmax.f32 %v2289, 0.0
    %v2296 = vmax.f32 %v2291, 0.0
    %v2297 = vpack.c.bf16 %v2295, %v2295
    %v2298 = vpack.c.bf16 %v2296, %v2296
    %v2299 = vld [vmem:[#allocation6] sm:$0xf]
    %v2300 = vld [vmem:[#allocation6 + $0x4] sm:$0xf]
    %v2301 = vld [vmem:[#allocation6 + $0x8] sm:$0xf]
    %v2302 = vld [vmem:[#allocation6 + $0xc] sm:$0xf]
    %v2303 = vld [vmem:[#allocation6 + $0x10] sm:$0xf]
    %v2304 = vld [vmem:[#allocation6 + $0x14] sm:$0xf]
    %v2305 = vld [vmem:[#allocation6 + $0x18] sm:$0xf]
    %v2306 = vld [vmem:[#allocation6 + $0x1c] sm:$0xf]
    %v2307 = vld [vmem:[#allocation6 + $0x20] sm:$0xf]
    %v2308 = vld [vmem:[#allocation6 + $0x24] sm:$0xf]
    %v2309 = vld [vmem:[#allocation6 + $0x28] sm:$0xf]
    %v2310 = vld [vmem:[#allocation6 + $0x2c] sm:$0xf]
    %v2311 = vld [vmem:[#allocation6 + $0x30] sm:$0xf]
    %v2312 = vld [vmem:[#allocation6 + $0x34] sm:$0xf]
    %v2313 = vld [vmem:[#allocation6 + $0x38] sm:$0xf]
    %v2314 = vld [vmem:[#allocation6 + $0x3c] sm:$0xf]
    %v2315 = vld [vmem:[#allocation6 + $0x40] sm:$0xf]
    %v2316 = vld [vmem:[#allocation6 + $0x44] sm:$0xf]
    %v2317 = vld [vmem:[#allocation6 + $0x48] sm:$0xf]
    %v2318 = vld [vmem:[#allocation6 + $0x4c] sm:$0xf]
    %v2319 = vld [vmem:[#allocation6 + $0x50] sm:$0xf]
    %v2320 = vld [vmem:[#allocation6 + $0x54] sm:$0xf]
    %v2321 = vld [vmem:[#allocation6 + $0x58] sm:$0xf]
    %v2322 = vld [vmem:[#allocation6 + $0x5c] sm:$0xf]
    %v2323 = vld [vmem:[#allocation6 + $0x60] sm:$0xf]
    %v2324 = vld [vmem:[#allocation6 + $0x64] sm:$0xf]
    %v2325 = vld [vmem:[#allocation6 + $0x68] sm:$0xf]
    %v2326 = vld [vmem:[#allocation6 + $0x6c] sm:$0xf]
    %v2327 = vld [vmem:[#allocation6 + $0x70] sm:$0xf]
    %v2328 = vld [vmem:[#allocation6 + $0x74] sm:$0xf]
    %v2329 = vld [vmem:[#allocation6 + $0x78] sm:$0xf]
    %v2330 = vld [vmem:[#allocation6 + $0x7c] sm:$0xf]
    %v2331 = vld [vmem:[%s6] sm:$0x1]
    %v2333 = vlaneseq
    %v2334 = vshrl.u32 %v2333, 7
    %v2335 = vsub.s32 0, %v2334
    %v2336 = vrot.slane %v2331, %v2335
    %v2370 = vunpack.c.l.b16 %v2299
    %v2371 = vunpack.c.l.b16 %v2300
    %v2372 = vunpack.c.l.b16 %v2301
    %v2373 = vunpack.c.l.b16 %v2302
    %v2374 = vunpack.c.l.b16 %v2303
    %v2375 = vunpack.c.l.b16 %v2304
    %v2376 = vunpack.c.l.b16 %v2305
    %v2377 = vunpack.c.l.b16 %v2306
    %v2378 = vunpack.c.l.b16 %v2307
    %v2379 = vunpack.c.l.b16 %v2308
    %v2380 = vunpack.c.l.b16 %v2309
    %v2381 = vunpack.c.l.b16 %v2310
    %v2382 = vunpack.c.l.b16 %v2311
    %v2383 = vunpack.c.l.b16 %v2312
    %v2384 = vunpack.c.l.b16 %v2313
    %v2385 = vunpack.c.l.b16 %v2314
    %v2386 = vunpack.c.l.b16 %v2315
    %v2387 = vunpack.c.l.b16 %v2316
    %v2388 = vunpack.c.l.b16 %v2317
    %v2389 = vunpack.c.l.b16 %v2318
    %v2390 = vunpack.c.l.b16 %v2319
    %v2391 = vunpack.c.l.b16 %v2320
    %v2392 = vunpack.c.l.b16 %v2321
    %v2393 = vunpack.c.l.b16 %v2322
    %v2394 = vunpack.c.l.b16 %v2323
    %v2395 = vunpack.c.l.b16 %v2324
    %v2396 = vunpack.c.l.b16 %v2325
    %v2397 = vunpack.c.l.b16 %v2326
    %v2398 = vunpack.c.l.b16 %v2327
    %v2399 = vunpack.c.l.b16 %v2328
    %v2400 = vunpack.c.l.b16 %v2329
    %v2401 = vunpack.c.l.b16 %v2330
    %v2402 = vpack.c.b16 %v2371, %v2370
    %v2403 = vpack.c.b16 %v2373, %v2372
    %v2404 = vpack.c.b16 %v2375, %v2374
    %v2405 = vpack.c.b16 %v2377, %v2376
    %v2406 = vpack.c.b16 %v2379, %v2378
    %v2407 = vpack.c.b16 %v2381, %v2380
    %v2408 = vpack.c.b16 %v2383, %v2382
    %v2409 = vpack.c.b16 %v2385, %v2384
    %v2410 = vpack.c.b16 %v2387, %v2386
    %v2411 = vpack.c.b16 %v2389, %v2388
    %v2412 = vpack.c.b16 %v2391, %v2390
    %v2413 = vpack.c.b16 %v2393, %v2392
    %v2414 = vpack.c.b16 %v2395, %v2394
    %v2415 = vpack.c.b16 %v2397, %v2396
    %v2416 = vpack.c.b16 %v2399, %v2398
    %v2417 = vpack.c.b16 %v2401, %v2400
    %2434 = vmatprep.subr.bf16.mxu0 0
    %2435 = vmatpush1.bf16.msra.mxu0 %v2409
    %2436 = vmatprep.subr.bf16.mxu0 0
    %2437 = vmatpush1.bf16.msra.mxu0 %v2408
    %2438 = vmatprep.subr.bf16.mxu0 0
    %2439 = vmatpush1.bf16.msra.mxu0 %v2407
    %2440 = vmatprep.subr.bf16.mxu0 0
    %2441 = vmatpush1.bf16.msra.mxu0 %v2406
    %2442 = vmatprep.subr.bf16.mxu0 0
    %2443 = vmatpush1.bf16.msra.mxu0 %v2405
    %2444 = vmatprep.subr.bf16.mxu0 0
    %2445 = vmatpush1.bf16.msra.mxu0 %v2404
    %2446 = vmatprep.subr.bf16.mxu0 0
    %2447 = vmatpush1.bf16.msra.mxu0 %v2403
    %2448 = vmatprep.subr.bf16.mxu0 0
    %2449 = vmatpush1.bf16.msra.mxu0 %v2402
    %2450 = vmatprep.subr.bf16.mxu0 0
    %2451 = vmatpush2.bf16.msra.mxu0 %v2417
    %2452 = vmatprep.subr.bf16.mxu0 0
    %2453 = vmatpush2.bf16.msra.mxu0 %v2416
    %2454 = vmatprep.subr.bf16.mxu0 0
    %2455 = vmatpush2.bf16.msra.mxu0 %v2415
    %2456 = vmatprep.subr.bf16.mxu0 0
    %2457 = vmatpush2.bf16.msra.mxu0 %v2414
    %2458 = vmatprep.subr.bf16.mxu0 0
    %2459 = vmatpush2.bf16.msra.mxu0 %v2413
    %2460 = vmatprep.subr.bf16.mxu0 0
    %2461 = vmatpush2.bf16.msra.mxu0 %v2412
    %2462 = vmatprep.subr.bf16.mxu0 0
    %2463 = vmatpush2.bf16.msra.mxu0 %v2411
    %2464 = vmatprep.subr.bf16.mxu0 0
    %2465 = vmatpush2.bf16.msra.mxu0 %v2410
    %2466 = vmatprep.mubr.bf16.mxu0 %v2298
    %2467 = vmatmul.mubr.bf16.gmra.mxu0 %v2297
    %v2468 = vpop.f32.mrf.mxu0
    %v2469 = vadd.f32 %v2336, %v2468
    %v2470 = vpop.f32.mrf.mxu0
    %v2471 = vpop.f32.mrf.mxu0
    %v2472 = vpop.f32.mrf.mxu0
    %2473 = vdwg.mxu0
    %v2474 = vmax.f32 %v2469, 0.0
    %v2475 = vpack.c.bf16 %v2474, %v2474
    %v2476 = vld [vmem:[%s7] sm:$0xf]
    %v2477 = vld [vmem:[%s7 + $0x4] sm:$0xf]
    %v2478 = vld [vmem:[%s7 + $0x8] sm:$0xf]
    %v2479 = vld [vmem:[%s7 + $0xc] sm:$0xf]
    %v2480 = vld [vmem:[%s7 + $0x10] sm:$0xf]
    %v2481 = vld [vmem:[%s7 + $0x14] sm:$0xf]
    %v2482 = vld [vmem:[%s7 + $0x18] sm:$0xf]
    %v2483 = vld [vmem:[%s7 + $0x1c] sm:$0xf]
    %v2484 = vld [vmem:[%s7 + $0x20] sm:$0xf]
    %v2485 = vld [vmem:[%s7 + $0x24] sm:$0xf]
    %v2486 = vld [vmem:[%s7 + $0x28] sm:$0xf]
    %v2487 = vld [vmem:[%s7 + $0x2c] sm:$0xf]
    %v2488 = vld [vmem:[%s7 + $0x30] sm:$0xf]
    %v2489 = vld [vmem:[%s7 + $0x34] sm:$0xf]
    %v2490 = vld [vmem:[%s7 + $0x38] sm:$0xf]
    %v2491 = vld [vmem:[%s7 + $0x3c] sm:$0xf]
    %v2492 = vld [vmem:[#allocation7] sm:$0x1]
    %v2494 = vlaneseq
    %v2495 = vshrl.u32 %v2494, 7
    %v2496 = vsub.s32 0, %v2495
    %v2497 = vrot.slane %v2492, %v2496
    %v2515 = vunpack.c.l.b16 %v2476
    %v2516 = vunpack.c.l.b16 %v2477
    %v2517 = vunpack.c.l.b16 %v2478
    %v2518 = vunpack.c.l.b16 %v2479
    %v2519 = vunpack.c.l.b16 %v2480
    %v2520 = vunpack.c.l.b16 %v2481
    %v2521 = vunpack.c.l.b16 %v2482
    %v2522 = vunpack.c.l.b16 %v2483
    %v2523 = vunpack.c.l.b16 %v2484
    %v2524 = vunpack.c.l.b16 %v2485
    %v2525 = vunpack.c.l.b16 %v2486
    %v2526 = vunpack.c.l.b16 %v2487
    %v2527 = vunpack.c.l.b16 %v2488
    %v2528 = vunpack.c.l.b16 %v2489
    %v2529 = vunpack.c.l.b16 %v2490
    %v2530 = vunpack.c.l.b16 %v2491
    %v2531 = vpack.c.b16 %v2516, %v2515
    %v2532 = vpack.c.b16 %v2518, %v2517
    %v2533 = vpack.c.b16 %v2520, %v2519
    %v2534 = vpack.c.b16 %v2522, %v2521
    %v2535 = vpack.c.b16 %v2524, %v2523
    %v2536 = vpack.c.b16 %v2526, %v2525
    %v2537 = vpack.c.b16 %v2528, %v2527
    %v2538 = vpack.c.b16 %v2530, %v2529
    %2547 = vmatprep.subr.bf16.mxu0 0
    %2548 = vmatpush1.bf16.msra.mxu0 %v2538
    %2549 = vmatprep.subr.bf16.mxu0 0
    %2550 = vmatpush1.bf16.msra.mxu0 %v2537
    %2551 = vmatprep.subr.bf16.mxu0 0
    %2552 = vmatpush1.bf16.msra.mxu0 %v2536
    %2553 = vmatprep.subr.bf16.mxu0 0
    %2554 = vmatpush1.bf16.msra.mxu0 %v2535
    %2555 = vmatprep.subr.bf16.mxu0 0
    %2556 = vmatpush1.bf16.msra.mxu0 %v2534
    %2557 = vmatprep.subr.bf16.mxu0 0
    %2558 = vmatpush1.bf16.msra.mxu0 %v2533
    %2559 = vmatprep.subr.bf16.mxu0 0
    %2560 = vmatpush1.bf16.msra.mxu0 %v2532
    %2561 = vmatprep.subr.bf16.mxu0 0
    %2562 = vmatpush1.bf16.msra.mxu0 %v2531
    %2563 = vmatprep.subr.bf16.mxu0 0
    %2564 = vmatpush2.bf16.msra.mxu0 0
    %2565 = vmatprep.subr.bf16.mxu0 0
    %2566 = vmatpush2.bf16.msra.mxu0 0
    %2567 = vmatprep.subr.bf16.mxu0 0
    %2568 = vmatpush2.bf16.msra.mxu0 0
    %2569 = vmatprep.subr.bf16.mxu0 0
    %2570 = vmatpush2.bf16.msra.mxu0 0
    %2571 = vmatprep.subr.bf16.mxu0 0
    %2572 = vmatpush2.bf16.msra.mxu0 0
    %2573 = vmatprep.subr.bf16.mxu0 0
    %2574 = vmatpush2.bf16.msra.mxu0 0
    %2575 = vmatprep.subr.bf16.mxu0 0
    %2576 = vmatpush2.bf16.msra.mxu0 0
    %2577 = vmatprep.subr.bf16.mxu0 0
    %2578 = vmatpush2.bf16.msra.mxu0 0
    %2579 = vmatprep.mubr.bf16.mxu0 0
    %2580 = vmatmul.mubr.bf16.gmra.mxu0 %v2475
    %v2581 = vpop.f32.mrf.mxu0
    %v2582 = vadd.f32 %v2497, %v2581
    %v2583 = vpop.f32.mrf.mxu0
    %v2584 = vpop.f32.mrf.mxu0
    %v2585 = vpop.f32.mrf.mxu0
    %2586 = vdwg.mxu0
    %2587 = vst [vmem:[%s9] sm:$0xff] %v2582
    // Predicated region
    $region54: #{mlp_mnist_forward.1} parent=1 // pred_check
      _
    $region55: #{mlp_mnist_forward.1} parent=1 // pred_check_branch
      %2589 = sbr.rel (0) target = $region57
    $region56: #{mlp_mnist_forward.1} parent=1 // pred_region
      _
    $region57: #{mlp_mnist_forward.1} parent=1 // pred_fallthru
      _
    // Predicated region
    $region58: #{mlp_mnist_forward.1} parent=1 // pred_check
      _
    $region59: #{mlp_mnist_forward.1} parent=1 // pred_check_branch
      %2591 = sbr.rel (0) target = $region61
    $region60: #{mlp_mnist_forward.1} parent=1 // pred_region
      _
    $region61: #{mlp_mnist_forward.1} parent=1 // pred_fallthru
      _
    %2592 = vsyncpa [#allocation3], 1
    %2593 = vsyncpa [#allocation5], 1
    %2594 = vsyncpa [#allocation8], 1

</llo_original>
